<compile_context>
chip_gen: v7x
topology: tpu7x:2x2x1
jax: 0.10.0
libtpu: 0.0.40
codegen_flags: <defaults>
</compile_context>

<pallas_src>
import numpy as np
import jax
import jax.numpy as jnp
from jax.experimental import pallas as pl
from jax.experimental.pallas import tpu as pltpu

NUM_RELATIONS = 5
NUM_BASES = 2
LATENT_DIM = (32, 32, 32, 32)
NUM_CLASSES = 5          # dataset.num_classes (ratings 1..5)
NUM_FEATURES = 4         # dataset.num_features (one-hot node labels; col0 = target user, col1 = target item)

STORE_DTYPE = jnp.bfloat16               # storage / matmul-input precision (f32 accumulation everywhere)
FOUT = LATENT_DIM[0]                     # all latent dims equal
FPAD = max(NUM_FEATURES, FOUT)           # uniform per-layer input width (layer 0 zero-padded)
assert len(set(LATENT_DIM)) == 1, "fused kernel assumes uniform latent dims"


# ------------------------------ fused Pallas kernel ------------------------------

def igmc_fused_kernel(x0_ref, adjc_ref, wcat_ref, root_ref, bias_ref,
                      selu_ref, seli_ref, w1u_ref, w1i_ref, b1_ref, w2_ref, b2_ref,
                      out_ref, x_cur, xw_stack, cs):
    """Entire IGMC eval forward.

    Per layer l:
        xw   = x @ W_cat[l]                    (N, R*Fout)     one wide MXU matmul
        stack xw -> (R*N, Fout) scratch (relation-major)
        acc  = x @ root[l] + bias[l] + adj_cat @ xw_stack      single long-K contraction
        x    = tanh(acc);  cs[:, l*Fout:(l+1)*Fout] = x        lane-dense 128-wide concat
    Head:
        xu = sel_u @ cs ; xi = sel_i @ cs       (one-hot gather as tiny MXU matmuls)
        out = log_softmax( relu(xu@W1u + xi@W1i + b1) @ W2 + b2 )
    """
    n = x0_ref.shape[0]
    num_layers = root_ref.shape[0]
    fout = root_ref.shape[2]

    x_cur[...] = x0_ref[...]

    # ---- fused RGCN stack: adjacency stays VMEM-resident across all layers ----
    for l in range(num_layers):
        x = x_cur[...]                                                     # (n, FPAD) bf16
        # all relations' x @ W_r in one wide matmul -> (n, R*fout)
        xw = jnp.dot(x, wcat_ref[l], preferred_element_type=jnp.float32)
        xw = xw.astype(xw_stack.dtype)
        # restack (n, R*fout) -> (R*n, fout) so the relation sum is one long-K dot
        for r in range(NUM_RELATIONS):
            xw_stack[r * n:(r + 1) * n, :] = xw[:, r * fout:(r + 1) * fout]
        acc = jnp.dot(x, root_ref[l], preferred_element_type=jnp.float32) + bias_ref[l]
        acc = acc + jnp.dot(adjc_ref[...], xw_stack[...],
                            preferred_element_type=jnp.float32)
        h = jnp.tanh(acc).astype(x_cur.dtype)
        x_cur[...] = h
        cs[:, l * fout:(l + 1) * fout] = h                                 # concat_states

    # ---- target-user / target-item gather + MLP head + log_softmax (all on-chip) ----
    csv = cs[...]                                                          # (n, L*fout) bf16
    xu = jnp.dot(selu_ref[...], csv, preferred_element_type=jnp.float32).astype(csv.dtype)
    xi = jnp.dot(seli_ref[...], csv, preferred_element_type=jnp.float32).astype(csv.dtype)
    h1 = (jnp.dot(xu, w1u_ref[...], preferred_element_type=jnp.float32)
          + jnp.dot(xi, w1i_ref[...], preferred_element_type=jnp.float32)
          + b1_ref[...])
    h1 = jnp.maximum(h1, 0.0).astype(w2_ref.dtype)
    logits = jnp.dot(h1, w2_ref[...], preferred_element_type=jnp.float32) + b2_ref[...]
    m = jnp.max(logits, axis=-1, keepdims=True)
    s = logits - m
    lse = jnp.log(jnp.sum(jnp.exp(s), axis=-1, keepdims=True))
    out_ref[...] = s - lse


# ------------------------------ wrapper ------------------------------

def igmc_forward(params, x_feat, adj, num_graphs):
    """x_feat: (N, NUM_FEATURES) f32 one-hot labels; adj: (R, N, N) row-normalized f32."""
    n = x_feat.shape[0]
    n_pad = -(-n // 8) * 8
    num_layers = len(params["convs"])
    cs_dim = num_layers * FOUT

    # ---- one-time XLA-side layout prep (reused by every layer inside the kernel) ----
    # node features, zero-padded to (n_pad, FPAD)
    x0 = jnp.pad(x_feat, ((0, n_pad - n), (0, FPAD - x_feat.shape[1]))).astype(STORE_DTYPE)

    # dense relational adjacency (R, N, N) -> long-K layout adj_cat[i, r*n_pad + j] = adj[r,i,j]
    adjp = jnp.pad(adj, ((0, 0), (0, n_pad - n), (0, n_pad - n)))
    adjc = jnp.transpose(adjp, (1, 0, 2)).reshape(n_pad, NUM_RELATIONS * n_pad).astype(STORE_DTYPE)

    # per-layer relation weights: fold the basis decomposition and concat relations along
    # the output dim -> (FPAD, R*FOUT); stack layers.
    wcat_l, root_l, bias_l = [], [], []
    for layer in params["convs"]:
        w = jnp.einsum("rb,bio->rio", layer["comp"], layer["basis"])       # (R, fin, FOUT)
        fin = w.shape[1]
        wcat = jnp.transpose(w, (1, 0, 2)).reshape(fin, NUM_RELATIONS * FOUT)
        wcat_l.append(jnp.pad(wcat, ((0, FPAD - fin), (0, 0))))
        root_l.append(jnp.pad(layer["root"], ((0, FPAD - fin), (0, 0))))
        bias_l.append(layer["bias"])                                       # (1, FOUT)
    wcat = jnp.stack(wcat_l).astype(STORE_DTYPE)                           # (L, FPAD, R*FOUT)
    root = jnp.stack(root_l).astype(STORE_DTYPE)                           # (L, FPAD, FOUT)
    bias = jnp.stack(bias_l).astype(jnp.float32)                           # (L, 1, FOUT)

    # target user (col0==1) / item (col1==1) rows -> one-hot selection matrices so the
    # gather becomes a small MXU matmul inside the kernel (no HBM round-trip).
    # NOTE: assumes exactly one flagged user and one flagged item per enclosing subgraph
    # (IGMC data construction guarantees this).
    u_idx = jnp.nonzero(x_feat[:, 0] == 1, size=num_graphs)[0]
    i_idx = jnp.nonzero(x_feat[:, 1] == 1, size=num_graphs)[0]
    sel_u = jax.nn.one_hot(u_idx, n_pad, dtype=STORE_DTYPE)                # (G, n_pad)
    sel_i = jax.nn.one_hot(i_idx, n_pad, dtype=STORE_DTYPE)

    # head weights; split W1 so cat([xu, xi]) @ W1 == xu @ W1u + xi @ W1i (no in-kernel concat)
    w1u = params["w1"][:cs_dim].astype(STORE_DTYPE)
    w1i = params["w1"][cs_dim:].astype(STORE_DTYPE)
    b1 = params["b1"].astype(jnp.float32)
    w2 = params["w2"].astype(STORE_DTYPE)
    b2 = params["b2"].astype(jnp.float32)

    operands = (x0, adjc, wcat, root, bias, sel_u, sel_i, w1u, w1i, b1, w2, b2)

    # explicit VMEM budget (v5e default scoped limit is only 16 MiB)
    sitem = jnp.dtype(STORE_DTYPE).itemsize
    in_bytes = sum(int(np.prod(a.shape)) * a.dtype.itemsize for a in operands)
    scratch_bytes = sitem * (n_pad * FPAD + NUM_RELATIONS * n_pad * FOUT + n_pad * cs_dim)
    vmem_limit = int(min(64 * 2**20, max(16 * 2**20, 2 * (in_bytes + scratch_bytes))))

    vmem_spec = pl.BlockSpec(memory_space=pltpu.MemorySpace.VMEM)
    return pl.pallas_call(
        igmc_fused_kernel,
        out_shape=jax.ShapeDtypeStruct((num_graphs, NUM_CLASSES), jnp.float32),
        in_specs=[vmem_spec] * len(operands),
        out_specs=vmem_spec,
        scratch_shapes=[
            pltpu.VMEM((n_pad, FPAD), STORE_DTYPE),                  # running node features
            pltpu.VMEM((NUM_RELATIONS * n_pad, FOUT), STORE_DTYPE),  # stacked x @ W_r
            pltpu.VMEM((n_pad, cs_dim), STORE_DTYPE),                # concat_states (128 lanes)
        ],
        compiler_params=pltpu.CompilerParams(vmem_limit_bytes=vmem_limit),
    )(*operands)


# ------------------------------ pure-JAX reference ------------------------------

def _q(v):
    """Quantize to the kernel's storage precision, compute in f32 (f32 accumulation in both)."""
    return v.astype(STORE_DTYPE).astype(jnp.float32)


def igmc_forward_ref(params, x_feat, adj, num_graphs):
    """Eval-mode forward of the original module, mirroring the kernel's bf16 storage points."""
    x = _q(x_feat)
    adjq = _q(adj)
    states = []
    for layer in params["convs"]:
        w = jnp.einsum("rb,bio->rio", layer["comp"], layer["basis"])
        out = x @ _q(layer["root"]) + layer["bias"]
        for r in range(NUM_RELATIONS):
            out = out + adjq[r] @ _q(x @ _q(w[r]))
        x = _q(jnp.tanh(out))
        states.append(x)
    cs = jnp.concatenate(states, axis=1)
    u_idx = jnp.nonzero(x_feat[:, 0] == 1, size=num_graphs)[0]
    i_idx = jnp.nonzero(x_feat[:, 1] == 1, size=num_graphs)[0]
    xh = jnp.concatenate([cs[u_idx], cs[i_idx]], axis=1)
    h = _q(jnp.maximum(xh @ _q(params["w1"]) + params["b1"], 0.0))
    logits = h @ _q(params["w2"]) + params["b2"]
    return jax.nn.log_softmax(logits, axis=-1)


# ------------------------------ setup helpers ------------------------------

def glorot(key, shape):
    fan_in, fan_out = shape[-2], shape[-1]
    lim = (6.0 / (fan_in + fan_out)) ** 0.5
    return jax.random.uniform(key, shape, jnp.float32, -lim, lim)


def init_params(key):
    dims = (NUM_FEATURES,) + LATENT_DIM
    convs = []
    for li in range(len(LATENT_DIM)):
        fin, fout = dims[li], dims[li + 1]
        key, k1, k2, k3 = jax.random.split(key, 4)
        convs.append(dict(
            basis=glorot(k1, (NUM_BASES, fin, fout)),
            comp=glorot(k2, (NUM_RELATIONS, NUM_BASES)),
            root=glorot(k3, (fin, fout)),
            bias=jnp.zeros((1, fout), jnp.float32),
        ))
    d_in = 2 * sum(LATENT_DIM)
    key, k1, k2 = jax.random.split(key, 3)
    return dict(
        convs=convs,
        w1=glorot(k1, (d_in, 128)), b1=jnp.zeros((1, 128), jnp.float32),
        w2=glorot(k2, (128, NUM_CLASSES)), b2=jnp.zeros((1, NUM_CLASSES), jnp.float32),
    )


def build_dense_adj(edge_index, edge_type, num_nodes):
    """Dense, per-relation, row-normalized adjacency (PyG RGCNConv mean aggregation)."""
    src, dst = edge_index
    adj = jnp.zeros((NUM_RELATIONS, num_nodes, num_nodes), jnp.float32)
    adj = adj.at[edge_type, dst, src].add(1.0)
    deg = adj.sum(axis=-1, keepdims=True)
    return adj / jnp.maximum(deg, 1.0)


# ------------------------------ main ------------------------------

if __name__ == "__main__":
    key = jax.random.PRNGKey(0)
    num_graphs = 2
    nodes_per_graph = 8
    num_nodes = num_graphs * nodes_per_graph
    edges_per_graph = 20

    # Node features: one target user (col0) and one target item (col1) per graph.
    xf = np.zeros((num_nodes, NUM_FEATURES), np.float32)
    for g in range(num_graphs):
        base = g * nodes_per_graph
        xf[base + 0, 0] = 1.0
        xf[base + 1, 1] = 1.0
        for j in range(2, nodes_per_graph):
            xf[base + j, 2 + (j % 2)] = 1.0
    x_feat = jnp.asarray(xf)

    # Deterministic random edges within each graph, with relation types.
    key, ks, kd, kt, kp = jax.random.split(key, 5)
    src_list, dst_list = [], []
    for g in range(num_graphs):
        base = g * nodes_per_graph
        ks, k1 = jax.random.split(ks)
        kd, k2 = jax.random.split(kd)
        src_list.append(base + jax.random.randint(k1, (edges_per_graph,), 0, nodes_per_graph))
        dst_list.append(base + jax.random.randint(k2, (edges_per_graph,), 0, nodes_per_graph))
    edge_index = jnp.stack([jnp.concatenate(src_list), jnp.concatenate(dst_list)])
    edge_type = jax.random.randint(kt, (edge_index.shape[1],), 0, NUM_RELATIONS)

    adj = build_dense_adj(edge_index, edge_type, num_nodes)
    params = init_params(kp)

    out = igmc_forward(params, x_feat, adj, num_graphs)
    out = jax.block_until_ready(out)

    ref = igmc_forward_ref(params, x_feat, adj, num_graphs)
    np.testing.assert_allclose(np.asarray(out), np.asarray(ref), atol=1e-2, rtol=1e-2)

    print("KERNEL_OK")
</pallas_src>

<mosaic_0001>
module attributes {stable_mosaic.version = 11 : i64} {
  func.func @igmc_fused_kernel(%arg0: memref<16x32xbf16, #tpu.memory_space<vmem>>, %arg1: memref<16x80xbf16, #tpu.memory_space<vmem>>, %arg2: memref<4x32x160xbf16, #tpu.memory_space<vmem>>, %arg3: memref<4x32x32xbf16, #tpu.memory_space<vmem>>, %arg4: memref<4x1x32xf32, #tpu.memory_space<vmem>>, %arg5: memref<2x16xbf16, #tpu.memory_space<vmem>>, %arg6: memref<2x16xbf16, #tpu.memory_space<vmem>>, %arg7: memref<128x128xbf16, #tpu.memory_space<vmem>>, %arg8: memref<128x128xbf16, #tpu.memory_space<vmem>>, %arg9: memref<1x128xf32, #tpu.memory_space<vmem>>, %arg10: memref<128x5xbf16, #tpu.memory_space<vmem>>, %arg11: memref<1x5xf32, #tpu.memory_space<vmem>>, %arg12: memref<2x5xf32, #tpu.memory_space<vmem>>, %arg13: memref<16x32xbf16, #tpu.memory_space<vmem>>, %arg14: memref<80x32xbf16, #tpu.memory_space<vmem>>, %arg15: memref<16x128xbf16, #tpu.memory_space<vmem>>) attributes {dimension_semantics = [], scalar_prefetch = 0 : i64, scratch_operands = 3 : i64, tpu.core_type = #tpu.core_type<tc>} {
    %c0 = arith.constant 0 : index
    %c0_0 = arith.constant 0 : index
    %0 = vector.load %arg0[%c0, %c0_0] : memref<16x32xbf16, #tpu.memory_space<vmem>>, vector<16x32xbf16>
    %c0_1 = arith.constant 0 : index
    %c0_2 = arith.constant 0 : index
    %1 = vector.load %arg13[%c0_1, %c0_2] : memref<16x32xbf16, #tpu.memory_space<vmem>>, vector<16x32xbf16>
    tpu.vector_store %arg13[%c0_1, %c0_2], %0 {strides = array<i32>} : memref<16x32xbf16, #tpu.memory_space<vmem>>, vector<16x32xbf16>,
    %c0_3 = arith.constant 0 : index
    %c0_4 = arith.constant 0 : index
    %2 = vector.load %arg13[%c0_3, %c0_4] : memref<16x32xbf16, #tpu.memory_space<vmem>>, vector<16x32xbf16>
    %c0_5 = arith.constant 0 : index
    %c0_6 = arith.constant 0 : index
    %c0_7 = arith.constant 0 : index
    %3 = vector.load %arg2[%c0_5, %c0_6, %c0_7] : memref<4x32x160xbf16, #tpu.memory_space<vmem>>, vector<1x32x160xbf16>
    %4 = vector.shape_cast %3 : vector<1x32x160xbf16> to vector<32x160xbf16>
    %cst = arith.constant dense<0.000000e+00> : vector<16x160xf32>
    %5 = tpu.matmul %2, %4, %cst {dimension_numbers = #tpu.dot_dimension_numbers<[1], [0], [0], [1], [0, 0, 1, 1], [], []>} : vector<16x32xbf16>, vector<32x160xbf16>, vector<16x160xf32> -> vector<16x160xf32>
    %6 = arith.truncf %5 : vector<16x160xf32> to vector<16x160xbf16>
    %7 = vector.extract_strided_slice %6 {offsets = [0, 0], sizes = [16, 32], strides = [1, 1]} : vector<16x160xbf16> to vector<16x32xbf16>
    %c0_8 = arith.constant 0 : index
    %c0_9 = arith.constant 0 : index
    %8 = vector.load %arg14[%c0_8, %c0_9] : memref<80x32xbf16, #tpu.memory_space<vmem>>, vector<16x32xbf16>
    tpu.vector_store %arg14[%c0_8, %c0_9], %7 {strides = array<i32>} : memref<80x32xbf16, #tpu.memory_space<vmem>>, vector<16x32xbf16>,
    %9 = vector.extract_strided_slice %6 {offsets = [0, 32], sizes = [16, 32], strides = [1, 1]} : vector<16x160xbf16> to vector<16x32xbf16>
    %c16 = arith.constant 16 : index
    %c0_10 = arith.constant 0 : index
    %10 = vector.load %arg14[%c16, %c0_10] : memref<80x32xbf16, #tpu.memory_space<vmem>>, vector<16x32xbf16>
    tpu.vector_store %arg14[%c16, %c0_10], %9 {strides = array<i32>} : memref<80x32xbf16, #tpu.memory_space<vmem>>, vector<16x32xbf16>,
    %11 = vector.extract_strided_slice %6 {offsets = [0, 64], sizes = [16, 32], strides = [1, 1]} : vector<16x160xbf16> to vector<16x32xbf16>
    %c32 = arith.constant 32 : index
    %c0_11 = arith.constant 0 : index
    %12 = vector.load %arg14[%c32, %c0_11] : memref<80x32xbf16, #tpu.memory_space<vmem>>, vector<16x32xbf16>
    tpu.vector_store %arg14[%c32, %c0_11], %11 {strides = array<i32>} : memref<80x32xbf16, #tpu.memory_space<vmem>>, vector<16x32xbf16>,
    %13 = vector.extract_strided_slice %6 {offsets = [0, 96], sizes = [16, 32], strides = [1, 1]} : vector<16x160xbf16> to vector<16x32xbf16>
    %c48 = arith.constant 48 : index
    %c0_12 = arith.constant 0 : index
    %14 = vector.load %arg14[%c48, %c0_12] : memref<80x32xbf16, #tpu.memory_space<vmem>>, vector<16x32xbf16>
    tpu.vector_store %arg14[%c48, %c0_12], %13 {strides = array<i32>} : memref<80x32xbf16, #tpu.memory_space<vmem>>, vector<16x32xbf16>,
    %15 = vector.extract_strided_slice %6 {offsets = [0, 128], sizes = [16, 32], strides = [1, 1]} : vector<16x160xbf16> to vector<16x32xbf16>
    %c64 = arith.constant 64 : index
    %c0_13 = arith.constant 0 : index
    %16 = vector.load %arg14[%c64, %c0_13] : memref<80x32xbf16, #tpu.memory_space<vmem>>, vector<16x32xbf16>
    tpu.vector_store %arg14[%c64, %c0_13], %15 {strides = array<i32>} : memref<80x32xbf16, #tpu.memory_space<vmem>>, vector<16x32xbf16>,
    %c0_14 = arith.constant 0 : index
    %c0_15 = arith.constant 0 : index
    %c0_16 = arith.constant 0 : index
    %17 = vector.load %arg3[%c0_14, %c0_15, %c0_16] : memref<4x32x32xbf16, #tpu.memory_space<vmem>>, vector<1x32x32xbf16>
    %18 = vector.shape_cast %17 : vector<1x32x32xbf16> to vector<32x32xbf16>
    %cst_17 = arith.constant dense<0.000000e+00> : vector<16x32xf32>
    %19 = tpu.matmul %2, %18, %cst_17 {dimension_numbers = #tpu.dot_dimension_numbers<[1], [0], [0], [1], [0, 0, 1, 1], [], []>} : vector<16x32xbf16>, vector<32x32xbf16>, vector<16x32xf32> -> vector<16x32xf32>
    %c0_18 = arith.constant 0 : index
    %c0_19 = arith.constant 0 : index
    %c0_20 = arith.constant 0 : index
    %20 = vector.load %arg4[%c0_18, %c0_19, %c0_20] : memref<4x1x32xf32, #tpu.memory_space<vmem>>, vector<1x1x32xf32>
    %21 = vector.shape_cast %20 : vector<1x1x32xf32> to vector<1x32xf32>
    %22 = vector.broadcast %21 : vector<1x32xf32> to vector<16x32xf32>
    %23 = arith.addf %19, %22 : vector<16x32xf32>
    %c0_21 = arith.constant 0 : index
    %c0_22 = arith.constant 0 : index
    %24 = vector.load %arg1[%c0_21, %c0_22] : memref<16x80xbf16, #tpu.memory_space<vmem>>, vector<16x80xbf16>
    %c0_23 = arith.constant 0 : index
    %c0_24 = arith.constant 0 : index
    %25 = vector.load %arg14[%c0_23, %c0_24] : memref<80x32xbf16, #tpu.memory_space<vmem>>, vector<80x32xbf16>
    %cst_25 = arith.constant dense<0.000000e+00> : vector<16x32xf32>
    %26 = tpu.matmul %24, %25, %cst_25 {dimension_numbers = #tpu.dot_dimension_numbers<[1], [0], [0], [1], [0, 0, 1, 1], [], []>} : vector<16x80xbf16>, vector<80x32xbf16>, vector<16x32xf32> -> vector<16x32xf32>
    %27 = arith.addf %23, %26 : vector<16x32xf32>
    %28 = math.tanh %27 : vector<16x32xf32>
    %29 = arith.truncf %28 : vector<16x32xf32> to vector<16x32xbf16>
    %c0_26 = arith.constant 0 : index
    %c0_27 = arith.constant 0 : index
    %30 = vector.load %arg13[%c0_26, %c0_27] : memref<16x32xbf16, #tpu.memory_space<vmem>>, vector<16x32xbf16>
    tpu.vector_store %arg13[%c0_26, %c0_27], %29 {strides = array<i32>} : memref<16x32xbf16, #tpu.memory_space<vmem>>, vector<16x32xbf16>,
    %c0_28 = arith.constant 0 : index
    %c0_29 = arith.constant 0 : index
    %31 = vector.load %arg15[%c0_28, %c0_29] : memref<16x128xbf16, #tpu.memory_space<vmem>>, vector<16x32xbf16>
    tpu.vector_store %arg15[%c0_28, %c0_29], %29 {strides = array<i32>} : memref<16x128xbf16, #tpu.memory_space<vmem>>, vector<16x32xbf16>,
    %c0_30 = arith.constant 0 : index
    %c0_31 = arith.constant 0 : index
    %32 = vector.load %arg13[%c0_30, %c0_31] : memref<16x32xbf16, #tpu.memory_space<vmem>>, vector<16x32xbf16>
    %c1 = arith.constant 1 : index
    %c0_32 = arith.constant 0 : index
    %c0_33 = arith.constant 0 : index
    %33 = vector.load %arg2[%c1, %c0_32, %c0_33] : memref<4x32x160xbf16, #tpu.memory_space<vmem>>, vector<1x32x160xbf16>
    %34 = vector.shape_cast %33 : vector<1x32x160xbf16> to vector<32x160xbf16>
    %cst_34 = arith.constant dense<0.000000e+00> : vector<16x160xf32>
    %35 = tpu.matmul %32, %34, %cst_34 {dimension_numbers = #tpu.dot_dimension_numbers<[1], [0], [0], [1], [0, 0, 1, 1], [], []>} : vector<16x32xbf16>, vector<32x160xbf16>, vector<16x160xf32> -> vector<16x160xf32>
    %36 = arith.truncf %35 : vector<16x160xf32> to vector<16x160xbf16>
    %37 = vector.extract_strided_slice %36 {offsets = [0, 0], sizes = [16, 32], strides = [1, 1]} : vector<16x160xbf16> to vector<16x32xbf16>
    %c0_35 = arith.constant 0 : index
    %c0_36 = arith.constant 0 : index
    %38 = vector.load %arg14[%c0_35, %c0_36] : memref<80x32xbf16, #tpu.memory_space<vmem>>, vector<16x32xbf16>
    tpu.vector_store %arg14[%c0_35, %c0_36], %37 {strides = array<i32>} : memref<80x32xbf16, #tpu.memory_space<vmem>>, vector<16x32xbf16>,
    %39 = vector.extract_strided_slice %36 {offsets = [0, 32], sizes = [16, 32], strides = [1, 1]} : vector<16x160xbf16> to vector<16x32xbf16>
    %c16_37 = arith.constant 16 : index
    %c0_38 = arith.constant 0 : index
    %40 = vector.load %arg14[%c16_37, %c0_38] : memref<80x32xbf16, #tpu.memory_space<vmem>>, vector<16x32xbf16>
    tpu.vector_store %arg14[%c16_37, %c0_38], %39 {strides = array<i32>} : memref<80x32xbf16, #tpu.memory_space<vmem>>, vector<16x32xbf16>,
    %41 = vector.extract_strided_slice %36 {offsets = [0, 64], sizes = [16, 32], strides = [1, 1]} : vector<16x160xbf16> to vector<16x32xbf16>
    %c32_39 = arith.constant 32 : index
    %c0_40 = arith.constant 0 : index
    %42 = vector.load %arg14[%c32_39, %c0_40] : memref<80x32xbf16, #tpu.memory_space<vmem>>, vector<16x32xbf16>
    tpu.vector_store %arg14[%c32_39, %c0_40], %41 {strides = array<i32>} : memref<80x32xbf16, #tpu.memory_space<vmem>>, vector<16x32xbf16>,
    %43 = vector.extract_strided_slice %36 {offsets = [0, 96], sizes = [16, 32], strides = [1, 1]} : vector<16x160xbf16> to vector<16x32xbf16>
    %c48_41 = arith.constant 48 : index
    %c0_42 = arith.constant 0 : index
    %44 = vector.load %arg14[%c48_41, %c0_42] : memref<80x32xbf16, #tpu.memory_space<vmem>>, vector<16x32xbf16>
    tpu.vector_store %arg14[%c48_41, %c0_42], %43 {strides = array<i32>} : memref<80x32xbf16, #tpu.memory_space<vmem>>, vector<16x32xbf16>,
    %45 = vector.extract_strided_slice %36 {offsets = [0, 128], sizes = [16, 32], strides = [1, 1]} : vector<16x160xbf16> to vector<16x32xbf16>
    %c64_43 = arith.constant 64 : index
    %c0_44 = arith.constant 0 : index
    %46 = vector.load %arg14[%c64_43, %c0_44] : memref<80x32xbf16, #tpu.memory_space<vmem>>, vector<16x32xbf16>
    tpu.vector_store %arg14[%c64_43, %c0_44], %45 {strides = array<i32>} : memref<80x32xbf16, #tpu.memory_space<vmem>>, vector<16x32xbf16>,
    %c1_45 = arith.constant 1 : index
    %c0_46 = arith.constant 0 : index
    %c0_47 = arith.constant 0 : index
    %47 = vector.load %arg3[%c1_45, %c0_46, %c0_47] : memref<4x32x32xbf16, #tpu.memory_space<vmem>>, vector<1x32x32xbf16>
    %48 = vector.shape_cast %47 : vector<1x32x32xbf16> to vector<32x32xbf16>
    %cst_48 = arith.constant dense<0.000000e+00> : vector<16x32xf32>
    %49 = tpu.matmul %32, %48, %cst_48 {dimension_numbers = #tpu.dot_dimension_numbers<[1], [0], [0], [1], [0, 0, 1, 1], [], []>} : vector<16x32xbf16>, vector<32x32xbf16>, vector<16x32xf32> -> vector<16x32xf32>
    %c1_49 = arith.constant 1 : index
    %c0_50 = arith.constant 0 : index
    %c0_51 = arith.constant 0 : index
    %50 = vector.load %arg4[%c1_49, %c0_50, %c0_51] : memref<4x1x32xf32, #tpu.memory_space<vmem>>, vector<1x1x32xf32>
    %51 = vector.shape_cast %50 : vector<1x1x32xf32> to vector<1x32xf32>
    %52 = vector.broadcast %51 : vector<1x32xf32> to vector<16x32xf32>
    %53 = arith.addf %49, %52 : vector<16x32xf32>
    %c0_52 = arith.constant 0 : index
    %c0_53 = arith.constant 0 : index
    %54 = vector.load %arg1[%c0_52, %c0_53] : memref<16x80xbf16, #tpu.memory_space<vmem>>, vector<16x80xbf16>
    %c0_54 = arith.constant 0 : index
    %c0_55 = arith.constant 0 : index
    %55 = vector.load %arg14[%c0_54, %c0_55] : memref<80x32xbf16, #tpu.memory_space<vmem>>, vector<80x32xbf16>
    %cst_56 = arith.constant dense<0.000000e+00> : vector<16x32xf32>
    %56 = tpu.matmul %54, %55, %cst_56 {dimension_numbers = #tpu.dot_dimension_numbers<[1], [0], [0], [1], [0, 0, 1, 1], [], []>} : vector<16x80xbf16>, vector<80x32xbf16>, vector<16x32xf32> -> vector<16x32xf32>
    %57 = arith.addf %53, %56 : vector<16x32xf32>
    %58 = math.tanh %57 : vector<16x32xf32>
    %59 = arith.truncf %58 : vector<16x32xf32> to vector<16x32xbf16>
    %c0_57 = arith.constant 0 : index
    %c0_58 = arith.constant 0 : index
    %60 = vector.load %arg13[%c0_57, %c0_58] : memref<16x32xbf16, #tpu.memory_space<vmem>>, vector<16x32xbf16>
    tpu.vector_store %arg13[%c0_57, %c0_58], %59 {strides = array<i32>} : memref<16x32xbf16, #tpu.memory_space<vmem>>, vector<16x32xbf16>,
    %c0_59 = arith.constant 0 : index
    %c32_60 = arith.constant 32 : index
    %61 = vector.load %arg15[%c0_59, %c32_60] : memref<16x128xbf16, #tpu.memory_space<vmem>>, vector<16x32xbf16>
    tpu.vector_store %arg15[%c0_59, %c32_60], %59 {strides = array<i32>} : memref<16x128xbf16, #tpu.memory_space<vmem>>, vector<16x32xbf16>,
    %c0_61 = arith.constant 0 : index
    %c0_62 = arith.constant 0 : index
    %62 = vector.load %arg13[%c0_61, %c0_62] : memref<16x32xbf16, #tpu.memory_space<vmem>>, vector<16x32xbf16>
    %c2 = arith.constant 2 : index
    %c0_63 = arith.constant 0 : index
    %c0_64 = arith.constant 0 : index
    %63 = vector.load %arg2[%c2, %c0_63, %c0_64] : memref<4x32x160xbf16, #tpu.memory_space<vmem>>, vector<1x32x160xbf16>
    %64 = vector.shape_cast %63 : vector<1x32x160xbf16> to vector<32x160xbf16>
    %cst_65 = arith.constant dense<0.000000e+00> : vector<16x160xf32>
    %65 = tpu.matmul %62, %64, %cst_65 {dimension_numbers = #tpu.dot_dimension_numbers<[1], [0], [0], [1], [0, 0, 1, 1], [], []>} : vector<16x32xbf16>, vector<32x160xbf16>, vector<16x160xf32> -> vector<16x160xf32>
    %66 = arith.truncf %65 : vector<16x160xf32> to vector<16x160xbf16>
    %67 = vector.extract_strided_slice %66 {offsets = [0, 0], sizes = [16, 32], strides = [1, 1]} : vector<16x160xbf16> to vector<16x32xbf16>
    %c0_66 = arith.constant 0 : index
    %c0_67 = arith.constant 0 : index
    %68 = vector.load %arg14[%c0_66, %c0_67] : memref<80x32xbf16, #tpu.memory_space<vmem>>, vector<16x32xbf16>
    tpu.vector_store %arg14[%c0_66, %c0_67], %67 {strides = array<i32>} : memref<80x32xbf16, #tpu.memory_space<vmem>>, vector<16x32xbf16>,
    %69 = vector.extract_strided_slice %66 {offsets = [0, 32], sizes = [16, 32], strides = [1, 1]} : vector<16x160xbf16> to vector<16x32xbf16>
    %c16_68 = arith.constant 16 : index
    %c0_69 = arith.constant 0 : index
    %70 = vector.load %arg14[%c16_68, %c0_69] : memref<80x32xbf16, #tpu.memory_space<vmem>>, vector<16x32xbf16>
    tpu.vector_store %arg14[%c16_68, %c0_69], %69 {strides = array<i32>} : memref<80x32xbf16, #tpu.memory_space<vmem>>, vector<16x32xbf16>,
    %71 = vector.extract_strided_slice %66 {offsets = [0, 64], sizes = [16, 32], strides = [1, 1]} : vector<16x160xbf16> to vector<16x32xbf16>
    %c32_70 = arith.constant 32 : index
    %c0_71 = arith.constant 0 : index
    %72 = vector.load %arg14[%c32_70, %c0_71] : memref<80x32xbf16, #tpu.memory_space<vmem>>, vector<16x32xbf16>
    tpu.vector_store %arg14[%c32_70, %c0_71], %71 {strides = array<i32>} : memref<80x32xbf16, #tpu.memory_space<vmem>>, vector<16x32xbf16>,
    %73 = vector.extract_strided_slice %66 {offsets = [0, 96], sizes = [16, 32], strides = [1, 1]} : vector<16x160xbf16> to vector<16x32xbf16>
    %c48_72 = arith.constant 48 : index
    %c0_73 = arith.constant 0 : index
    %74 = vector.load %arg14[%c48_72, %c0_73] : memref<80x32xbf16, #tpu.memory_space<vmem>>, vector<16x32xbf16>
    tpu.vector_store %arg14[%c48_72, %c0_73], %73 {strides = array<i32>} : memref<80x32xbf16, #tpu.memory_space<vmem>>, vector<16x32xbf16>,
    %75 = vector.extract_strided_slice %66 {offsets = [0, 128], sizes = [16, 32], strides = [1, 1]} : vector<16x160xbf16> to vector<16x32xbf16>
    %c64_74 = arith.constant 64 : index
    %c0_75 = arith.constant 0 : index
    %76 = vector.load %arg14[%c64_74, %c0_75] : memref<80x32xbf16, #tpu.memory_space<vmem>>, vector<16x32xbf16>
    tpu.vector_store %arg14[%c64_74, %c0_75], %75 {strides = array<i32>} : memref<80x32xbf16, #tpu.memory_space<vmem>>, vector<16x32xbf16>,
    %c2_76 = arith.constant 2 : index
    %c0_77 = arith.constant 0 : index
    %c0_78 = arith.constant 0 : index
    %77 = vector.load %arg3[%c2_76, %c0_77, %c0_78] : memref<4x32x32xbf16, #tpu.memory_space<vmem>>, vector<1x32x32xbf16>
    %78 = vector.shape_cast %77 : vector<1x32x32xbf16> to vector<32x32xbf16>
    %cst_79 = arith.constant dense<0.000000e+00> : vector<16x32xf32>
    %79 = tpu.matmul %62, %78, %cst_79 {dimension_numbers = #tpu.dot_dimension_numbers<[1], [0], [0], [1], [0, 0, 1, 1], [], []>} : vector<16x32xbf16>, vector<32x32xbf16>, vector<16x32xf32> -> vector<16x32xf32>
    %c2_80 = arith.constant 2 : index
    %c0_81 = arith.constant 0 : index
    %c0_82 = arith.constant 0 : index
    %80 = vector.load %arg4[%c2_80, %c0_81, %c0_82] : memref<4x1x32xf32, #tpu.memory_space<vmem>>, vector<1x1x32xf32>
    %81 = vector.shape_cast %80 : vector<1x1x32xf32> to vector<1x32xf32>
    %82 = vector.broadcast %81 : vector<1x32xf32> to vector<16x32xf32>
    %83 = arith.addf %79, %82 : vector<16x32xf32>
    %c0_83 = arith.constant 0 : index
    %c0_84 = arith.constant 0 : index
    %84 = vector.load %arg1[%c0_83, %c0_84] : memref<16x80xbf16, #tpu.memory_space<vmem>>, vector<16x80xbf16>
    %c0_85 = arith.constant 0 : index
    %c0_86 = arith.constant 0 : index
    %85 = vector.load %arg14[%c0_85, %c0_86] : memref<80x32xbf16, #tpu.memory_space<vmem>>, vector<80x32xbf16>
    %cst_87 = arith.constant dense<0.000000e+00> : vector<16x32xf32>
    %86 = tpu.matmul %84, %85, %cst_87 {dimension_numbers = #tpu.dot_dimension_numbers<[1], [0], [0], [1], [0, 0, 1, 1], [], []>} : vector<16x80xbf16>, vector<80x32xbf16>, vector<16x32xf32> -> vector<16x32xf32>
    %87 = arith.addf %83, %86 : vector<16x32xf32>
    %88 = math.tanh %87 : vector<16x32xf32>
    %89 = arith.truncf %88 : vector<16x32xf32> to vector<16x32xbf16>
    %c0_88 = arith.constant 0 : index
    %c0_89 = arith.constant 0 : index
    %90 = vector.load %arg13[%c0_88, %c0_89] : memref<16x32xbf16, #tpu.memory_space<vmem>>, vector<16x32xbf16>
    tpu.vector_store %arg13[%c0_88, %c0_89], %89 {strides = array<i32>} : memref<16x32xbf16, #tpu.memory_space<vmem>>, vector<16x32xbf16>,
    %c0_90 = arith.constant 0 : index
    %c64_91 = arith.constant 64 : index
    %91 = vector.load %arg15[%c0_90, %c64_91] : memref<16x128xbf16, #tpu.memory_space<vmem>>, vector<16x32xbf16>
    tpu.vector_store %arg15[%c0_90, %c64_91], %89 {strides = array<i32>} : memref<16x128xbf16, #tpu.memory_space<vmem>>, vector<16x32xbf16>,
    %c0_92 = arith.constant 0 : index
    %c0_93 = arith.constant 0 : index
    %92 = vector.load %arg13[%c0_92, %c0_93] : memref<16x32xbf16, #tpu.memory_space<vmem>>, vector<16x32xbf16>
    %c3 = arith.constant 3 : index
    %c0_94 = arith.constant 0 : index
    %c0_95 = arith.constant 0 : index
    %93 = vector.load %arg2[%c3, %c0_94, %c0_95] : memref<4x32x160xbf16, #tpu.memory_space<vmem>>, vector<1x32x160xbf16>
    %94 = vector.shape_cast %93 : vector<1x32x160xbf16> to vector<32x160xbf16>
    %cst_96 = arith.constant dense<0.000000e+00> : vector<16x160xf32>
    %95 = tpu.matmul %92, %94, %cst_96 {dimension_numbers = #tpu.dot_dimension_numbers<[1], [0], [0], [1], [0, 0, 1, 1], [], []>} : vector<16x32xbf16>, vector<32x160xbf16>, vector<16x160xf32> -> vector<16x160xf32>
    %96 = arith.truncf %95 : vector<16x160xf32> to vector<16x160xbf16>
    %97 = vector.extract_strided_slice %96 {offsets = [0, 0], sizes = [16, 32], strides = [1, 1]} : vector<16x160xbf16> to vector<16x32xbf16>
    %c0_97 = arith.constant 0 : index
    %c0_98 = arith.constant 0 : index
    %98 = vector.load %arg14[%c0_97, %c0_98] : memref<80x32xbf16, #tpu.memory_space<vmem>>, vector<16x32xbf16>
    tpu.vector_store %arg14[%c0_97, %c0_98], %97 {strides = array<i32>} : memref<80x32xbf16, #tpu.memory_space<vmem>>, vector<16x32xbf16>,
    %99 = vector.extract_strided_slice %96 {offsets = [0, 32], sizes = [16, 32], strides = [1, 1]} : vector<16x160xbf16> to vector<16x32xbf16>
    %c16_99 = arith.constant 16 : index
    %c0_100 = arith.constant 0 : index
    %100 = vector.load %arg14[%c16_99, %c0_100] : memref<80x32xbf16, #tpu.memory_space<vmem>>, vector<16x32xbf16>
    tpu.vector_store %arg14[%c16_99, %c0_100], %99 {strides = array<i32>} : memref<80x32xbf16, #tpu.memory_space<vmem>>, vector<16x32xbf16>,
    %101 = vector.extract_strided_slice %96 {offsets = [0, 64], sizes = [16, 32], strides = [1, 1]} : vector<16x160xbf16> to vector<16x32xbf16>
    %c32_101 = arith.constant 32 : index
    %c0_102 = arith.constant 0 : index
    %102 = vector.load %arg14[%c32_101, %c0_102] : memref<80x32xbf16, #tpu.memory_space<vmem>>, vector<16x32xbf16>
    tpu.vector_store %arg14[%c32_101, %c0_102], %101 {strides = array<i32>} : memref<80x32xbf16, #tpu.memory_space<vmem>>, vector<16x32xbf16>,
    %103 = vector.extract_strided_slice %96 {offsets = [0, 96], sizes = [16, 32], strides = [1, 1]} : vector<16x160xbf16> to vector<16x32xbf16>
    %c48_103 = arith.constant 48 : index
    %c0_104 = arith.constant 0 : index
    %104 = vector.load %arg14[%c48_103, %c0_104] : memref<80x32xbf16, #tpu.memory_space<vmem>>, vector<16x32xbf16>
    tpu.vector_store %arg14[%c48_103, %c0_104], %103 {strides = array<i32>} : memref<80x32xbf16, #tpu.memory_space<vmem>>, vector<16x32xbf16>,
    %105 = vector.extract_strided_slice %96 {offsets = [0, 128], sizes = [16, 32], strides = [1, 1]} : vector<16x160xbf16> to vector<16x32xbf16>
    %c64_105 = arith.constant 64 : index
    %c0_106 = arith.constant 0 : index
    %106 = vector.load %arg14[%c64_105, %c0_106] : memref<80x32xbf16, #tpu.memory_space<vmem>>, vector<16x32xbf16>
    tpu.vector_store %arg14[%c64_105, %c0_106], %105 {strides = array<i32>} : memref<80x32xbf16, #tpu.memory_space<vmem>>, vector<16x32xbf16>,
    %c3_107 = arith.constant 3 : index
    %c0_108 = arith.constant 0 : index
    %c0_109 = arith.constant 0 : index
    %107 = vector.load %arg3[%c3_107, %c0_108, %c0_109] : memref<4x32x32xbf16, #tpu.memory_space<vmem>>, vector<1x32x32xbf16>
    %108 = vector.shape_cast %107 : vector<1x32x32xbf16> to vector<32x32xbf16>
    %cst_110 = arith.constant dense<0.000000e+00> : vector<16x32xf32>
    %109 = tpu.matmul %92, %108, %cst_110 {dimension_numbers = #tpu.dot_dimension_numbers<[1], [0], [0], [1], [0, 0, 1, 1], [], []>} : vector<16x32xbf16>, vector<32x32xbf16>, vector<16x32xf32> -> vector<16x32xf32>
    %c3_111 = arith.constant 3 : index
    %c0_112 = arith.constant 0 : index
    %c0_113 = arith.constant 0 : index
    %110 = vector.load %arg4[%c3_111, %c0_112, %c0_113] : memref<4x1x32xf32, #tpu.memory_space<vmem>>, vector<1x1x32xf32>
    %111 = vector.shape_cast %110 : vector<1x1x32xf32> to vector<1x32xf32>
    %112 = vector.broadcast %111 : vector<1x32xf32> to vector<16x32xf32>
    %113 = arith.addf %109, %112 : vector<16x32xf32>
    %c0_114 = arith.constant 0 : index
    %c0_115 = arith.constant 0 : index
    %114 = vector.load %arg1[%c0_114, %c0_115] : memref<16x80xbf16, #tpu.memory_space<vmem>>, vector<16x80xbf16>
    %c0_116 = arith.constant 0 : index
    %c0_117 = arith.constant 0 : index
    %115 = vector.load %arg14[%c0_116, %c0_117] : memref<80x32xbf16, #tpu.memory_space<vmem>>, vector<80x32xbf16>
    %cst_118 = arith.constant dense<0.000000e+00> : vector<16x32xf32>
    %116 = tpu.matmul %114, %115, %cst_118 {dimension_numbers = #tpu.dot_dimension_numbers<[1], [0], [0], [1], [0, 0, 1, 1], [], []>} : vector<16x80xbf16>, vector<80x32xbf16>, vector<16x32xf32> -> vector<16x32xf32>
    %117 = arith.addf %113, %116 : vector<16x32xf32>
    %118 = math.tanh %117 : vector<16x32xf32>
    %119 = arith.truncf %118 : vector<16x32xf32> to vector<16x32xbf16>
    %c0_119 = arith.constant 0 : index
    %c0_120 = arith.constant 0 : index
    %120 = vector.load %arg13[%c0_119, %c0_120] : memref<16x32xbf16, #tpu.memory_space<vmem>>, vector<16x32xbf16>
    tpu.vector_store %arg13[%c0_119, %c0_120], %119 {strides = array<i32>} : memref<16x32xbf16, #tpu.memory_space<vmem>>, vector<16x32xbf16>,
    %c0_121 = arith.constant 0 : index
    %c96 = arith.constant 96 : index
    %121 = vector.load %arg15[%c0_121, %c96] : memref<16x128xbf16, #tpu.memory_space<vmem>>, vector<16x32xbf16>
    tpu.vector_store %arg15[%c0_121, %c96], %119 {strides = array<i32>} : memref<16x128xbf16, #tpu.memory_space<vmem>>, vector<16x32xbf16>,
    %c0_122 = arith.constant 0 : index
    %c0_123 = arith.constant 0 : index
    %122 = vector.load %arg15[%c0_122, %c0_123] : memref<16x128xbf16, #tpu.memory_space<vmem>>, vector<16x128xbf16>
    %c0_124 = arith.constant 0 : index
    %c0_125 = arith.constant 0 : index
    %123 = vector.load %arg5[%c0_124, %c0_125] : memref<2x16xbf16, #tpu.memory_space<vmem>>, vector<2x16xbf16>
    %cst_126 = arith.constant dense<0.000000e+00> : vector<2x128xf32>
    %124 = tpu.matmul %123, %122, %cst_126 {dimension_numbers = #tpu.dot_dimension_numbers<[1], [0], [0], [1], [0, 0, 1, 1], [], []>} : vector<2x16xbf16>, vector<16x128xbf16>, vector<2x128xf32> -> vector<2x128xf32>
    %125 = arith.truncf %124 : vector<2x128xf32> to vector<2x128xbf16>
    %c0_127 = arith.constant 0 : index
    %c0_128 = arith.constant 0 : index
    %126 = vector.load %arg6[%c0_127, %c0_128] : memref<2x16xbf16, #tpu.memory_space<vmem>>, vector<2x16xbf16>
    %cst_129 = arith.constant dense<0.000000e+00> : vector<2x128xf32>
    %127 = tpu.matmul %126, %122, %cst_129 {dimension_numbers = #tpu.dot_dimension_numbers<[1], [0], [0], [1], [0, 0, 1, 1], [], []>} : vector<2x16xbf16>, vector<16x128xbf16>, vector<2x128xf32> -> vector<2x128xf32>
    %128 = arith.truncf %127 : vector<2x128xf32> to vector<2x128xbf16>
    %c0_130 = arith.constant 0 : index
    %c0_131 = arith.constant 0 : index
    %129 = vector.load %arg7[%c0_130, %c0_131] : memref<128x128xbf16, #tpu.memory_space<vmem>>, vector<128x128xbf16>
    %cst_132 = arith.constant dense<0.000000e+00> : vector<2x128xf32>
    %130 = tpu.matmul %125, %129, %cst_132 {dimension_numbers = #tpu.dot_dimension_numbers<[1], [0], [0], [1], [0, 0, 1, 1], [], []>} : vector<2x128xbf16>, vector<128x128xbf16>, vector<2x128xf32> -> vector<2x128xf32>
    %c0_133 = arith.constant 0 : index
    %c0_134 = arith.constant 0 : index
    %131 = vector.load %arg8[%c0_133, %c0_134] : memref<128x128xbf16, #tpu.memory_space<vmem>>, vector<128x128xbf16>
    %cst_135 = arith.constant dense<0.000000e+00> : vector<2x128xf32>
    %132 = tpu.matmul %128, %131, %cst_135 {dimension_numbers = #tpu.dot_dimension_numbers<[1], [0], [0], [1], [0, 0, 1, 1], [], []>} : vector<2x128xbf16>, vector<128x128xbf16>, vector<2x128xf32> -> vector<2x128xf32>
    %133 = arith.addf %130, %132 : vector<2x128xf32>
    %c0_136 = arith.constant 0 : index
    %c0_137 = arith.constant 0 : index
    %134 = vector.load %arg9[%c0_136, %c0_137] : memref<1x128xf32, #tpu.memory_space<vmem>>, vector<1x128xf32>
    %135 = vector.broadcast %134 : vector<1x128xf32> to vector<2x128xf32>
    %136 = arith.addf %133, %135 : vector<2x128xf32>
    %cst_138 = arith.constant 0.000000e+00 : f32
    %137 = vector.broadcast %cst_138 : f32 to vector<2x128xf32>
    %138 = arith.maximumf %136, %137 : vector<2x128xf32>
    %139 = arith.truncf %138 : vector<2x128xf32> to vector<2x128xbf16>
    %c0_139 = arith.constant 0 : index
    %c0_140 = arith.constant 0 : index
    %140 = vector.load %arg10[%c0_139, %c0_140] : memref<128x5xbf16, #tpu.memory_space<vmem>>, vector<128x5xbf16>
    %cst_141 = arith.constant dense<0.000000e+00> : vector<2x5xf32>
    %141 = tpu.matmul %139, %140, %cst_141 {dimension_numbers = #tpu.dot_dimension_numbers<[1], [0], [0], [1], [0, 0, 1, 1], [], []>} : vector<2x128xbf16>, vector<128x5xbf16>, vector<2x5xf32> -> vector<2x5xf32>
    %c0_142 = arith.constant 0 : index
    %c0_143 = arith.constant 0 : index
    %142 = vector.load %arg11[%c0_142, %c0_143] : memref<1x5xf32, #tpu.memory_space<vmem>>, vector<1x5xf32>
    %143 = vector.broadcast %142 : vector<1x5xf32> to vector<2x5xf32>
    %144 = arith.addf %141, %143 : vector<2x5xf32>
    %cst_144 = arith.constant dense<0xFF800000> : vector<2xf32>
    %145 = vector.multi_reduction <maximumf>, %144, %cst_144 [1] : vector<2x5xf32> to vector<2xf32>
    %146 = vector.shape_cast %145 : vector<2xf32> to vector<2x1xf32>
    %147 = vector.broadcast %146 : vector<2x1xf32> to vector<2x5xf32>
    %148 = arith.subf %144, %147 : vector<2x5xf32>
    %149 = math.exp %148 : vector<2x5xf32>
    %cst_145 = arith.constant dense<0.000000e+00> : vector<2xf32>
    %150 = vector.multi_reduction <add>, %149, %cst_145 [1] : vector<2x5xf32> to vector<2xf32>
    %151 = vector.shape_cast %150 : vector<2xf32> to vector<2x1xf32>
    %152 = math.log %151 : vector<2x1xf32>
    %153 = vector.broadcast %152 : vector<2x1xf32> to vector<2x5xf32>
    %154 = arith.subf %148, %153 : vector<2x5xf32>
    %c0_146 = arith.constant 0 : index
    %c0_147 = arith.constant 0 : index
    %155 = vector.load %arg12[%c0_146, %c0_147] : memref<2x5xf32, #tpu.memory_space<vmem>>, vector<2x5xf32>
    tpu.vector_store %arg12[%c0_146, %c0_147], %154 {strides = array<i32>} : memref<2x5xf32, #tpu.memory_space<vmem>>, vector<2x5xf32>,
    return
  }
}

</mosaic_0001>

<llo_original>
// kernel: tpu_custom_call.1
$region0: #{tpu_custom_call.1}
  #allocation0 [shape = 'u32[]', space=smem, size = 0x4, offset = 0x4, fixed_abs, tag = 'smem constant byte address 0x4 - core index']
  #allocation1 [shape = 'u32[144,128]{1,0:T(1,128)}', space=vmem, size = 0x12000, scoped, tag = 'internal scratch']
  #allocation2 [shape = 'bf16[16,32]{1,0:T(16,128)(2,1)}', space=vmem, size = 0x1000, scoped, tag = 'scratch operand']
  #allocation3 [shape = 'bf16[80,32]{1,0:T(16,128)(2,1)}', space=vmem, size = 0x5000, scoped, tag = 'scratch operand']
  #allocation4 [shape = 'bf16[16,128]{1,0:T(16,128)(2,1)}', space=vmem, size = 0x1000, scoped, tag = 'scratch operand']
  %s0 = inlined_call_operand.vmem [shape: bf16[16,32], index: 0, kind: input, shape index: {}]
  %s1 = inlined_call_operand.hbm [shape: bf16[16,80], index: 1, kind: input, shape index: {}]
  %s2 = inlined_call_operand.hbm [shape: bf16[4,32,160], index: 2, kind: input, shape index: {}]
  %s3 = inlined_call_operand.vmem [shape: bf16[4,32,32], index: 3, kind: input, shape index: {}]
  %s4 = inlined_call_operand.vmem [shape: f32[4,1,32], index: 4, kind: input, shape index: {}]
  %s5 = inlined_call_operand.vmem [shape: bf16[2,16], index: 5, kind: input, shape index: {}]
  %s6 = inlined_call_operand.vmem [shape: bf16[2,16], index: 6, kind: input, shape index: {}]
  %s7 = inlined_call_operand.hbm [shape: bf16[128,128], index: 7, kind: input, shape index: {}]
  %s8 = inlined_call_operand.hbm [shape: bf16[128,128], index: 8, kind: input, shape index: {}]
  %s9 = inlined_call_operand.vmem [shape: f32[1,128], index: 9, kind: input, shape index: {}]
  %s10 = inlined_call_operand.vmem [shape: bf16[128,5], index: 10, kind: input, shape index: {}]
  %s11 = inlined_call_operand.vmem [shape: f32[1,5], index: 11, kind: input, shape index: {}]
  %s12 = inlined_call_operand.hbm [shape: f32[2,5], index: 12, kind: output, shape index: {}]
  %s13 = sld [smem:[#allocation0]]
  $region74: #{tpu_custom_call.1} parent=0
    _
  %s15 = ssub.s32 1, %s13
  %s16 = scalar_select 0, %s15, %s13
  $region1: #{tpu_custom_call.1} parent=0
    #allocation5 [shape = 'u8[4096]{0}', space=vmem, size = 0x1000, scoped, tag = 'input window, operand 1, single buffered']
    #allocation6 [shape = 's32[1]{0}', space=sflag, size = 0x4, scoped, tag = 'scoped memory for tpu_custom_call.1']
    #allocation7 [shape = 's32[1]{0}', space=sflag, size = 0x4, scoped, tag = 'scoped memory for tpu_custom_call.1']
    #allocation8 [shape = 'u8[65536]{0}', space=vmem, size = 0x10000, scoped, tag = 'input window, operand 2, single buffered']
    #allocation9 [shape = 's32[1]{0}', space=sflag, size = 0x4, scoped, tag = 'scoped memory for tpu_custom_call.1']
    #allocation10 [shape = 'u8[32768]{0}', space=vmem, size = 0x8000, scoped, tag = 'input window, operand 7, single buffered']
    #allocation11 [shape = 'u8[32768]{0}', space=vmem, size = 0x8000, scoped, tag = 'input window, operand 8, single buffered']
    #allocation12 [shape = 's32[1]{0}', space=sflag, size = 0x4, scoped, tag = 'scoped memory for tpu_custom_call.1']
    #allocation13 [shape = 'u8[1024]{0}', space=vmem, size = 0x400, scoped, tag = 'output window, operand 0, single buffered']
    %17 = vsyncpa [#allocation6], 0
    %18 = vsyncpa [#allocation9], 0
    %19 = vsyncpa [#allocation12], 0
    %20 = vsyncpa [#allocation7], 0
    // Predicated region
    $region2: #{tpu_custom_call.1} parent=1 // pred_check
      _
    $region3: #{tpu_custom_call.1} parent=1 // pred_check_branch
      %22 = sbr.rel (0) target = $region5
    $region4: #{tpu_custom_call.1} parent=1 // pred_region
      _
    $region5: #{tpu_custom_call.1} parent=1 // pred_fallthru
      _
    // Predicated region
    $region6: #{tpu_custom_call.1} parent=1 // pred_check
      _
    $region7: #{tpu_custom_call.1} parent=1 // pred_check_branch
      %24 = sbr.rel (0) target = $region9
    $region8: #{tpu_custom_call.1} parent=1 // pred_region
      %s26 = ssub.s32 128, 128
      %27 = vsyncadd [#allocation6], %s26
      %s28 = sshll.u32 [#allocation5], 4
      %s29 = int_to_ptr.vmem [resolvable:$true] %s28
      %34 = dma.hbm_to_vmem [thread:$0]  %s1, 128, %s29, [#allocation6], 64, 64, 4
    $region9: #{tpu_custom_call.1} parent=1 // pred_fallthru
      _
    // Predicated region
    $region10: #{tpu_custom_call.1} parent=1 // pred_check
      _
    $region11: #{tpu_custom_call.1} parent=1 // pred_check_branch
      %36 = sbr.rel (0) target = $region13
    $region12: #{tpu_custom_call.1} parent=1 // pred_region
      %s38 = ssub.s32 2048, 2048
      %39 = vsyncadd [#allocation9], %s38
      %s40 = sshll.u32 [#allocation8], 4
      %s41 = int_to_ptr.vmem [resolvable:$true] %s40
      %46 = dma.hbm_to_vmem [thread:$0]  %s2, 2048, %s41, [#allocation9], 128, 128, 8
    $region13: #{tpu_custom_call.1} parent=1 // pred_fallthru
      _
    // Predicated region
    $region14: #{tpu_custom_call.1} parent=1 // pred_check
      _
    $region15: #{tpu_custom_call.1} parent=1 // pred_check_branch
      %48 = sbr.rel (0) target = $region17
    $region16: #{tpu_custom_call.1} parent=1 // pred_region
      _
    $region17: #{tpu_custom_call.1} parent=1 // pred_fallthru
      _
    // Predicated region
    $region18: #{tpu_custom_call.1} parent=1 // pred_check
      _
    $region19: #{tpu_custom_call.1} parent=1 // pred_check_branch
      %50 = sbr.rel (0) target = $region21
    $region20: #{tpu_custom_call.1} parent=1 // pred_region
      _
    $region21: #{tpu_custom_call.1} parent=1 // pred_fallthru
      _
    // Predicated region
    $region22: #{tpu_custom_call.1} parent=1 // pred_check
      _
    $region23: #{tpu_custom_call.1} parent=1 // pred_check_branch
      %52 = sbr.rel (0) target = $region25
    $region24: #{tpu_custom_call.1} parent=1 // pred_region
      _
    $region25: #{tpu_custom_call.1} parent=1 // pred_fallthru
      _
    // Predicated region
    $region26: #{tpu_custom_call.1} parent=1 // pred_check
      _
    $region27: #{tpu_custom_call.1} parent=1 // pred_check_branch
      %54 = sbr.rel (0) target = $region29
    $region28: #{tpu_custom_call.1} parent=1 // pred_region
      _
    $region29: #{tpu_custom_call.1} parent=1 // pred_fallthru
      _
    // Predicated region
    $region30: #{tpu_custom_call.1} parent=1 // pred_check
      _
    $region31: #{tpu_custom_call.1} parent=1 // pred_check_branch
      %56 = sbr.rel (0) target = $region33
    $region32: #{tpu_custom_call.1} parent=1 // pred_region
      %s58 = ssub.s32 1024, 1024
      %59 = vsyncadd [#allocation9], %s58
      %s60 = sshll.u32 [#allocation10], 4
      %s61 = int_to_ptr.vmem [resolvable:$true] %s60
      %66 = dma.hbm_to_vmem [thread:$0]  %s7, 1024, %s61, [#allocation9], 64, 64, 4
    $region33: #{tpu_custom_call.1} parent=1 // pred_fallthru
      _
    // Predicated region
    $region34: #{tpu_custom_call.1} parent=1 // pred_check
      _
    $region35: #{tpu_custom_call.1} parent=1 // pred_check_branch
      %68 = sbr.rel (0) target = $region37
    $region36: #{tpu_custom_call.1} parent=1 // pred_region
      %s70 = ssub.s32 1024, 1024
      %71 = vsyncadd [#allocation12], %s70
      %s72 = sshll.u32 [#allocation11], 4
      %s73 = int_to_ptr.vmem [resolvable:$true] %s72
      %78 = dma.hbm_to_vmem [thread:$0]  %s8, 1024, %s73, [#allocation12], 64, 64, 4
    $region37: #{tpu_custom_call.1} parent=1 // pred_fallthru
      _
    // Predicated region
    $region38: #{tpu_custom_call.1} parent=1 // pred_check
      _
    $region39: #{tpu_custom_call.1} parent=1 // pred_check_branch
      %80 = sbr.rel (0) target = $region41
    $region40: #{tpu_custom_call.1} parent=1 // pred_region
      _
    $region41: #{tpu_custom_call.1} parent=1 // pred_fallthru
      _
    // Predicated region
    $region42: #{tpu_custom_call.1} parent=1 // pred_check
      _
    $region43: #{tpu_custom_call.1} parent=1 // pred_check_branch
      %82 = sbr.rel (0) target = $region45
    $region44: #{tpu_custom_call.1} parent=1 // pred_region
      _
    $region45: #{tpu_custom_call.1} parent=1 // pred_fallthru
      _
    // Predicated region
    $region46: #{tpu_custom_call.1} parent=1 // pred_check
      _
    $region47: #{tpu_custom_call.1} parent=1 // pred_check_branch
      %84 = sbr.rel (0) target = $region49
    $region48: #{tpu_custom_call.1} parent=1 // pred_region
      _
    $region49: #{tpu_custom_call.1} parent=1 // pred_fallthru
      _
    // Predicated region
    $region50: #{tpu_custom_call.1} parent=1 // pred_check
      _
    $region51: #{tpu_custom_call.1} parent=1 // pred_check_branch
      %86 = sbr.rel (0) target = $region53
    $region52: #{tpu_custom_call.1} parent=1 // pred_region
      %87 = dma.done [#allocation6], 128
    $region53: #{tpu_custom_call.1} parent=1 // pred_fallthru
      _
    // Predicated region
    $region54: #{tpu_custom_call.1} parent=1 // pred_check
      _
    $region55: #{tpu_custom_call.1} parent=1 // pred_check_branch
      %89 = sbr.rel (0) target = $region57
    $region56: #{tpu_custom_call.1} parent=1 // pred_region
      %90 = dma.done [#allocation9], 2048
    $region57: #{tpu_custom_call.1} parent=1 // pred_fallthru
      _
    // Predicated region
    $region58: #{tpu_custom_call.1} parent=1 // pred_check
      _
    $region59: #{tpu_custom_call.1} parent=1 // pred_check_branch
      %92 = sbr.rel (0) target = $region61
    $region60: #{tpu_custom_call.1} parent=1 // pred_region
      %93 = dma.done [#allocation9], 1024
    $region61: #{tpu_custom_call.1} parent=1 // pred_fallthru
      _
    // Predicated region
    $region62: #{tpu_custom_call.1} parent=1 // pred_check
      _
    $region63: #{tpu_custom_call.1} parent=1 // pred_check_branch
      %95 = sbr.rel (0) target = $region65
    $region64: #{tpu_custom_call.1} parent=1 // pred_region
      %96 = dma.done [#allocation12], 1024
    $region65: #{tpu_custom_call.1} parent=1 // pred_fallthru
      _
    %v98 = vld [vmem:[%s0] sm:$0xf]
    %v99 = vld [vmem:[%s0 + $0x4] sm:$0xf]
    %v102 = vunpack.c.l.b16 %v98
    %v103 = vunpack.c.l.b16 %v99
    %v104 = vpack.c.b16 %v103, %v102
    %vm106 = vcmask 261120
    %107 = vst.msk [vmem:[#allocation2] sm:$0xff] %vm106, %v104
    %v108 = vld [vmem:[#allocation2] sm:$0xff]
    %v109 = vld [vmem:[#allocation8] sm:$0xff]
    %v110 = vld [vmem:[#allocation8 + $0x8] sm:$0xff]
    %v111 = vld [vmem:[#allocation8 + $0x10] sm:$0xff]
    %v112 = vld [vmem:[#allocation8 + $0x18] sm:$0xff]
    %v117 = vunpack.c.l.b16 %v109
    %v118 = vunpack.c.h.b16 %v109
    %v119 = vunpack.c.l.b16 %v110
    %v120 = vunpack.c.h.b16 %v110
    %v121 = vunpack.c.l.b16 %v111
    %v122 = vunpack.c.h.b16 %v111
    %v123 = vunpack.c.l.b16 %v112
    %v124 = vunpack.c.h.b16 %v112
    %v125 = vpack.c.b16 %v119, %v117
    %v126 = vpack.c.b16 %v120, %v118
    %v127 = vpack.c.b16 %v123, %v121
    %v128 = vpack.c.b16 %v124, %v122
    %v134 = vsel %vm106, %v108, 0
    %136 = vmatprep.subr.bf16.mxu0 %v126
    %137 = vmatpush1.bf16.msra.mxu0 %v125
    %138 = vmatprep.subr.bf16.mxu0 %v128
    %139 = vmatpush1.bf16.msra.mxu0 %v127
    %140 = vmatprep.subr.bf16.mxu0 0
    %141 = vmatpush1.bf16.msra.mxu0 0
    %142 = vmatprep.subr.bf16.mxu0 0
    %143 = vmatpush1.bf16.msra.mxu0 0
    %144 = vmatprep.subr.bf16.mxu0 0
    %145 = vmatpush1.bf16.msra.mxu0 0
    %146 = vmatprep.subr.bf16.mxu0 0
    %147 = vmatpush1.bf16.msra.mxu0 0
    %148 = vmatprep.subr.bf16.mxu0 0
    %149 = vmatpush1.bf16.msra.mxu0 0
    %150 = vmatprep.subr.bf16.mxu0 0
    %151 = vmatpush1.bf16.msra.mxu0 0
    %152 = vmatprep.subr.bf16.mxu0 0
    %153 = vmatpush1.bf16.msra.mxu0 0
    %154 = vmatprep.subr.bf16.mxu0 0
    %155 = vmatpush1.bf16.msra.mxu0 0
    %156 = vmatprep.subr.bf16.mxu0 0
    %157 = vmatpush1.bf16.msra.mxu0 0
    %158 = vmatprep.subr.bf16.mxu0 0
    %159 = vmatpush1.bf16.msra.mxu0 0
    %160 = vmatprep.subr.bf16.mxu0 0
    %161 = vmatpush1.bf16.msra.mxu0 0
    %162 = vmatprep.subr.bf16.mxu0 0
    %163 = vmatpush1.bf16.msra.mxu0 0
    %164 = vmatprep.subr.bf16.mxu0 0
    %165 = vmatpush1.bf16.msra.mxu0 0
    %166 = vmatprep.subr.bf16.mxu0 0
    %167 = vmatpush1.bf16.msra.mxu0 0
    %168 = vmatprep.mubr.bf16.mxu0 0
    %169 = vmatmul.mubr.bf16.gmra.mrb[0].mxu0 %v134
    %v170 = vpop.f32.mrb[0].mxu0
    %v171 = vadd.f32 0.0, %v170
    %v172 = vpop.f32.mrb[0].mxu0
    %v173 = vadd.f32 0.0, %v172
    %v174 = vpop.f32.mrb[0].mxu0
    %v175 = vadd.f32 0.0, %v174
    %v176 = vpop.f32.mrb[0].mxu0
    %v177 = vadd.f32 0.0, %v176
    %178 = vdwg.mxu0
    %v179 = vpack.c.bf16 %v175, %v171
    %v180 = vpack.c.bf16 %v177, %v173
    %181 = vst.msk [vmem:[#allocation3] sm:$0xff] %vm106, %v179
    %183 = vrot.lane.b32.xlu0 %v179, 96
    %v184 = vpop.permute.xlu0 %183
    %186 = vst.msk [vmem:[#allocation3 + $0x8] sm:$0xff] %vm106, %v184
    %187 = vrot.lane.b32.xlu0 %v179, 64
    %v188 = vpop.permute.xlu0 %187
    %190 = vst.msk [vmem:[#allocation3 + $0x10] sm:$0xff] %vm106, %v188
    %191 = vrot.lane.b32.xlu0 %v179, 32
    %v192 = vpop.permute.xlu0 %191
    %194 = vst.msk [vmem:[#allocation3 + $0x18] sm:$0xff] %vm106, %v192
    %195 = vst.msk [vmem:[#allocation3 + $0x20] sm:$0xff] %vm106, %v180
    %v196 = vld [vmem:[%s3] sm:$0xf]
    %v197 = vld [vmem:[%s3 + $0x4] sm:$0xf]
    %v198 = vld [vmem:[%s3 + $0x8] sm:$0xf]
    %v199 = vld [vmem:[%s3 + $0xc] sm:$0xf]
    %v200 = vld [vmem:[%s4] sm:$0x1]
    %v202 = vlaneseq
    %v203 = vshrl.u32 %v202, 7
    %v204 = vsub.s32 0, %v203
    %v205 = vrot.slane %v200, %v204
    %v211 = vunpack.c.l.b16 %v196
    %v212 = vunpack.c.l.b16 %v197
    %v213 = vunpack.c.l.b16 %v198
    %v214 = vunpack.c.l.b16 %v199
    %v215 = vpack.c.b16 %v212, %v211
    %v216 = vpack.c.b16 %v214, %v213
    %219 = vmatprep.subr.bf16.mxu0 0
    %220 = vmatpush1.bf16.msra.mxu0 %v215
    %221 = vmatprep.subr.bf16.mxu0 0
    %222 = vmatpush1.bf16.msra.mxu0 %v216
    %223 = vmatprep.subr.bf16.mxu0 0
    %224 = vmatpush1.bf16.msra.mxu0 0
    %225 = vmatprep.subr.bf16.mxu0 0
    %226 = vmatpush1.bf16.msra.mxu0 0
    %227 = vmatprep.subr.bf16.mxu0 0
    %228 = vmatpush1.bf16.msra.mxu0 0
    %229 = vmatprep.subr.bf16.mxu0 0
    %230 = vmatpush1.bf16.msra.mxu0 0
    %231 = vmatprep.subr.bf16.mxu0 0
    %232 = vmatpush1.bf16.msra.mxu0 0
    %233 = vmatprep.subr.bf16.mxu0 0
    %234 = vmatpush1.bf16.msra.mxu0 0
    %235 = vmatprep.subr.bf16.mxu0 0
    %236 = vmatpush1.bf16.msra.mxu0 0
    %237 = vmatprep.subr.bf16.mxu0 0
    %238 = vmatpush1.bf16.msra.mxu0 0
    %239 = vmatprep.subr.bf16.mxu0 0
    %240 = vmatpush1.bf16.msra.mxu0 0
    %241 = vmatprep.subr.bf16.mxu0 0
    %242 = vmatpush1.bf16.msra.mxu0 0
    %243 = vmatprep.subr.bf16.mxu0 0
    %244 = vmatpush1.bf16.msra.mxu0 0
    %245 = vmatprep.subr.bf16.mxu0 0
    %246 = vmatpush1.bf16.msra.mxu0 0
    %247 = vmatprep.subr.bf16.mxu0 0
    %248 = vmatpush1.bf16.msra.mxu0 0
    %249 = vmatprep.subr.bf16.mxu0 0
    %250 = vmatpush1.bf16.msra.mxu0 0
    %251 = vmatprep.mubr.bf16.mxu0 0
    %252 = vmatmul.mubr.bf16.gmra.mrb[0].mxu0 %v134
    %v253 = vpop.f32.mrb[0].mxu0
    %v254 = vadd.f32 %v205, %v253
    %v255 = vpop.f32.mrb[0].mxu0
    %v256 = vpop.f32.mrb[0].mxu0
    %v257 = vadd.f32 %v205, %v256
    %v258 = vpop.f32.mrb[0].mxu0
    %259 = vdwg.mxu0
    %v260 = vld [vmem:[#allocation5] sm:$0xf]
    %v261 = vld [vmem:[#allocation5 + $0x4] sm:$0xf]
    %v262 = vld [vmem:[#allocation3] sm:$0xff]
    %v263 = vld [vmem:[#allocation3 + $0x8] sm:$0xff]
    %v264 = vld [vmem:[#allocation3 + $0x10] sm:$0xff]
    %v265 = vld [vmem:[#allocation3 + $0x18] sm:$0xff]
    %v266 = vld [vmem:[#allocation3 + $0x20] sm:$0xff]
    %v269 = vunpack.c.l.b16 %v260
    %v270 = vunpack.c.l.b16 %v261
    %v271 = vpack.c.b16 %v270, %v269
    %vm272 = vcmask 654336
    %v274 = vsel %vm272, %v271, 0
    %276 = vmatprep.subr.bf16.mxu0 0
    %277 = vmatpush1.bf16.msra.mxu0 %v262
    %278 = vmatprep.subr.bf16.mxu0 0
    %279 = vmatpush1.bf16.msra.mxu0 %v263
    %280 = vmatprep.subr.bf16.mxu0 0
    %281 = vmatpush1.bf16.msra.mxu0 %v264
    %282 = vmatprep.subr.bf16.mxu0 0
    %283 = vmatpush1.bf16.msra.mxu0 %v265
    %284 = vmatprep.subr.bf16.mxu0 0
    %285 = vmatpush1.bf16.msra.mxu0 %v266
    %286 = vmatprep.subr.bf16.mxu0 0
    %287 = vmatpush1.bf16.msra.mxu0 0
    %288 = vmatprep.subr.bf16.mxu0 0
    %289 = vmatpush1.bf16.msra.mxu0 0
    %290 = vmatprep.subr.bf16.mxu0 0
    %291 = vmatpush1.bf16.msra.mxu0 0
    %292 = vmatprep.subr.bf16.mxu0 0
    %293 = vmatpush1.bf16.msra.mxu0 0
    %294 = vmatprep.subr.bf16.mxu0 0
    %295 = vmatpush1.bf16.msra.mxu0 0
    %296 = vmatprep.subr.bf16.mxu0 0
    %297 = vmatpush1.bf16.msra.mxu0 0
    %298 = vmatprep.subr.bf16.mxu0 0
    %299 = vmatpush1.bf16.msra.mxu0 0
    %300 = vmatprep.subr.bf16.mxu0 0
    %301 = vmatpush1.bf16.msra.mxu0 0
    %302 = vmatprep.subr.bf16.mxu0 0
    %303 = vmatpush1.bf16.msra.mxu0 0
    %304 = vmatprep.subr.bf16.mxu0 0
    %305 = vmatpush1.bf16.msra.mxu0 0
    %306 = vmatprep.subr.bf16.mxu0 0
    %307 = vmatpush1.bf16.msra.mxu0 0
    %308 = vmatprep.mubr.bf16.mxu0 0
    %309 = vmatmul.mubr.bf16.gmra.mrb[0].mxu0 %v274
    %v310 = vpop.f32.mrb[0].mxu0
    %v311 = vadd.f32 0.0, %v310
    %v312 = vpop.f32.mrb[0].mxu0
    %v313 = vpop.f32.mrb[0].mxu0
    %v314 = vadd.f32 0.0, %v313
    %v315 = vpop.f32.mrb[0].mxu0
    %316 = vdwg.mxu0
    %v317 = vadd.f32 %v254, %v311
    %v318 = vadd.f32 %v257, %v314
    %v319 = vtanh.pop %v317
    %v320 = vtanh.pop %v318
    %v321 = vpack.c.bf16 %v320, %v319
    %322 = vst.msk [vmem:[#allocation2] sm:$0xff] %vm106, %v321
    %323 = vst.msk [vmem:[#allocation4] sm:$0xff] %vm106, %v321
    %v324 = vld [vmem:[#allocation2] sm:$0xff]
    %s325 = scalar_lea.vmem [#allocation8], 32
    %v326 = vld [vmem:[%s325] sm:$0xff]
    %v327 = vld [vmem:[%s325 + $0x8] sm:$0xff]
    %v328 = vld [vmem:[%s325 + $0x10] sm:$0xff]
    %v329 = vld [vmem:[%s325 + $0x18] sm:$0xff]
    %v334 = vunpack.c.l.b16 %v326
    %v335 = vunpack.c.h.b16 %v326
    %v336 = vunpack.c.l.b16 %v327
    %v337 = vunpack.c.h.b16 %v327
    %v338 = vunpack.c.l.b16 %v328
    %v339 = vunpack.c.h.b16 %v328
    %v340 = vunpack.c.l.b16 %v329
    %v341 = vunpack.c.h.b16 %v329
    %v342 = vpack.c.b16 %v336, %v334
    %v343 = vpack.c.b16 %v337, %v335
    %v344 = vpack.c.b16 %v340, %v338
    %v345 = vpack.c.b16 %v341, %v339
    %v351 = vsel %vm106, %v324, 0
    %353 = vmatprep.subr.bf16.mxu0 %v343
    %354 = vmatpush1.bf16.msra.mxu0 %v342
    %355 = vmatprep.subr.bf16.mxu0 %v345
    %356 = vmatpush1.bf16.msra.mxu0 %v344
    %357 = vmatprep.subr.bf16.mxu0 0
    %358 = vmatpush1.bf16.msra.mxu0 0
    %359 = vmatprep.subr.bf16.mxu0 0
    %360 = vmatpush1.bf16.msra.mxu0 0
    %361 = vmatprep.subr.bf16.mxu0 0
    %362 = vmatpush1.bf16.msra.mxu0 0
    %363 = vmatprep.subr.bf16.mxu0 0
    %364 = vmatpush1.bf16.msra.mxu0 0
    %365 = vmatprep.subr.bf16.mxu0 0
    %366 = vmatpush1.bf16.msra.mxu0 0
    %367 = vmatprep.subr.bf16.mxu0 0
    %368 = vmatpush1.bf16.msra.mxu0 0
    %369 = vmatprep.subr.bf16.mxu0 0
    %370 = vmatpush1.bf16.msra.mxu0 0
    %371 = vmatprep.subr.bf16.mxu0 0
    %372 = vmatpush1.bf16.msra.mxu0 0
    %373 = vmatprep.subr.bf16.mxu0 0
    %374 = vmatpush1.bf16.msra.mxu0 0
    %375 = vmatprep.subr.bf16.mxu0 0
    %376 = vmatpush1.bf16.msra.mxu0 0
    %377 = vmatprep.subr.bf16.mxu0 0
    %378 = vmatpush1.bf16.msra.mxu0 0
    %379 = vmatprep.subr.bf16.mxu0 0
    %380 = vmatpush1.bf16.msra.mxu0 0
    %381 = vmatprep.subr.bf16.mxu0 0
    %382 = vmatpush1.bf16.msra.mxu0 0
    %383 = vmatprep.subr.bf16.mxu0 0
    %384 = vmatpush1.bf16.msra.mxu0 0
    %385 = vmatprep.mubr.bf16.mxu0 0
    %386 = vmatmul.mubr.bf16.gmra.mrb[0].mxu0 %v351
    %v387 = vpop.f32.mrb[0].mxu0
    %v388 = vadd.f32 0.0, %v387
    %v389 = vpop.f32.mrb[0].mxu0
    %v390 = vadd.f32 0.0, %v389
    %v391 = vpop.f32.mrb[0].mxu0
    %v392 = vadd.f32 0.0, %v391
    %v393 = vpop.f32.mrb[0].mxu0
    %v394 = vadd.f32 0.0, %v393
    %395 = vdwg.mxu0
    %v396 = vpack.c.bf16 %v392, %v388
    %v397 = vpack.c.bf16 %v394, %v390
    %398 = vst.msk [vmem:[#allocation3] sm:$0xff] %vm106, %v396
    %400 = vrot.lane.b32.xlu0 %v396, 96
    %v401 = vpop.permute.xlu0 %400
    %403 = vst.msk [vmem:[#allocation3 + $0x8] sm:$0xff] %vm106, %v401
    %404 = vrot.lane.b32.xlu0 %v396, 64
    %v405 = vpop.permute.xlu0 %404
    %407 = vst.msk [vmem:[#allocation3 + $0x10] sm:$0xff] %vm106, %v405
    %408 = vrot.lane.b32.xlu0 %v396, 32
    %v409 = vpop.permute.xlu0 %408
    %411 = vst.msk [vmem:[#allocation3 + $0x18] sm:$0xff] %vm106, %v409
    %412 = vst.msk [vmem:[#allocation3 + $0x20] sm:$0xff] %vm106, %v397
    %s413 = scalar_lea.vmem %s3, 16
    %v414 = vld [vmem:[%s413] sm:$0xf]
    %v415 = vld [vmem:[%s413 + $0x4] sm:$0xf]
    %v416 = vld [vmem:[%s413 + $0x8] sm:$0xf]
    %v417 = vld [vmem:[%s413 + $0xc] sm:$0xf]
    %s418 = scalar_lea.vmem %s4, 1
    %v419 = vld [vmem:[%s418] sm:$0x1]
    %v421 = vlaneseq
    %v422 = vshrl.u32 %v421, 7
    %v423 = vsub.s32 0, %v422
    %v424 = vrot.slane %v419, %v423
    %v430 = vunpack.c.l.b16 %v414
    %v431 = vunpack.c.l.b16 %v415
    %v432 = vunpack.c.l.b16 %v416
    %v433 = vunpack.c.l.b16 %v417
    %v434 = vpack.c.b16 %v431, %v430
    %v435 = vpack.c.b16 %v433, %v432
    %438 = vmatprep.subr.bf16.mxu0 0
    %439 = vmatpush1.bf16.msra.mxu0 %v434
    %440 = vmatprep.subr.bf16.mxu0 0
    %441 = vmatpush1.bf16.msra.mxu0 %v435
    %442 = vmatprep.subr.bf16.mxu0 0
    %443 = vmatpush1.bf16.msra.mxu0 0
    %444 = vmatprep.subr.bf16.mxu0 0
    %445 = vmatpush1.bf16.msra.mxu0 0
    %446 = vmatprep.subr.bf16.mxu0 0
    %447 = vmatpush1.bf16.msra.mxu0 0
    %448 = vmatprep.subr.bf16.mxu0 0
    %449 = vmatpush1.bf16.msra.mxu0 0
    %450 = vmatprep.subr.bf16.mxu0 0
    %451 = vmatpush1.bf16.msra.mxu0 0
    %452 = vmatprep.subr.bf16.mxu0 0
    %453 = vmatpush1.bf16.msra.mxu0 0
    %454 = vmatprep.subr.bf16.mxu0 0
    %455 = vmatpush1.bf16.msra.mxu0 0
    %456 = vmatprep.subr.bf16.mxu0 0
    %457 = vmatpush1.bf16.msra.mxu0 0
    %458 = vmatprep.subr.bf16.mxu0 0
    %459 = vmatpush1.bf16.msra.mxu0 0
    %460 = vmatprep.subr.bf16.mxu0 0
    %461 = vmatpush1.bf16.msra.mxu0 0
    %462 = vmatprep.subr.bf16.mxu0 0
    %463 = vmatpush1.bf16.msra.mxu0 0
    %464 = vmatprep.subr.bf16.mxu0 0
    %465 = vmatpush1.bf16.msra.mxu0 0
    %466 = vmatprep.subr.bf16.mxu0 0
    %467 = vmatpush1.bf16.msra.mxu0 0
    %468 = vmatprep.subr.bf16.mxu0 0
    %469 = vmatpush1.bf16.msra.mxu0 0
    %470 = vmatprep.mubr.bf16.mxu0 0
    %471 = vmatmul.mubr.bf16.gmra.mrb[0].mxu0 %v351
    %v472 = vpop.f32.mrb[0].mxu0
    %v473 = vadd.f32 %v424, %v472
    %v474 = vpop.f32.mrb[0].mxu0
    %v475 = vpop.f32.mrb[0].mxu0
    %v476 = vadd.f32 %v424, %v475
    %v477 = vpop.f32.mrb[0].mxu0
    %478 = vdwg.mxu0
    %v479 = vld [vmem:[#allocation5] sm:$0xf]
    %v480 = vld [vmem:[#allocation5 + $0x4] sm:$0xf]
    %v481 = vld [vmem:[#allocation3] sm:$0xff]
    %v482 = vld [vmem:[#allocation3 + $0x8] sm:$0xff]
    %v483 = vld [vmem:[#allocation3 + $0x10] sm:$0xff]
    %v484 = vld [vmem:[#allocation3 + $0x18] sm:$0xff]
    %v485 = vld [vmem:[#allocation3 + $0x20] sm:$0xff]
    %v488 = vunpack.c.l.b16 %v479
    %v489 = vunpack.c.l.b16 %v480
    %v490 = vpack.c.b16 %v489, %v488
    %v492 = vsel %vm272, %v490, 0
    %494 = vmatprep.subr.bf16.mxu0 0
    %495 = vmatpush1.bf16.msra.mxu0 %v481
    %496 = vmatprep.subr.bf16.mxu0 0
    %497 = vmatpush1.bf16.msra.mxu0 %v482
    %498 = vmatprep.subr.bf16.mxu0 0
    %499 = vmatpush1.bf16.msra.mxu0 %v483
    %500 = vmatprep.subr.bf16.mxu0 0
    %501 = vmatpush1.bf16.msra.mxu0 %v484
    %502 = vmatprep.subr.bf16.mxu0 0
    %503 = vmatpush1.bf16.msra.mxu0 %v485
    %504 = vmatprep.subr.bf16.mxu0 0
    %505 = vmatpush1.bf16.msra.mxu0 0
    %506 = vmatprep.subr.bf16.mxu0 0
    %507 = vmatpush1.bf16.msra.mxu0 0
    %508 = vmatprep.subr.bf16.mxu0 0
    %509 = vmatpush1.bf16.msra.mxu0 0
    %510 = vmatprep.subr.bf16.mxu0 0
    %511 = vmatpush1.bf16.msra.mxu0 0
    %512 = vmatprep.subr.bf16.mxu0 0
    %513 = vmatpush1.bf16.msra.mxu0 0
    %514 = vmatprep.subr.bf16.mxu0 0
    %515 = vmatpush1.bf16.msra.mxu0 0
    %516 = vmatprep.subr.bf16.mxu0 0
    %517 = vmatpush1.bf16.msra.mxu0 0
    %518 = vmatprep.subr.bf16.mxu0 0
    %519 = vmatpush1.bf16.msra.mxu0 0
    %520 = vmatprep.subr.bf16.mxu0 0
    %521 = vmatpush1.bf16.msra.mxu0 0
    %522 = vmatprep.subr.bf16.mxu0 0
    %523 = vmatpush1.bf16.msra.mxu0 0
    %524 = vmatprep.subr.bf16.mxu0 0
    %525 = vmatpush1.bf16.msra.mxu0 0
    %526 = vmatprep.mubr.bf16.mxu0 0
    %527 = vmatmul.mubr.bf16.gmra.mrb[0].mxu0 %v492
    %v528 = vpop.f32.mrb[0].mxu0
    %v529 = vadd.f32 0.0, %v528
    %v530 = vpop.f32.mrb[0].mxu0
    %v531 = vpop.f32.mrb[0].mxu0
    %v532 = vadd.f32 0.0, %v531
    %v533 = vpop.f32.mrb[0].mxu0
    %534 = vdwg.mxu0
    %v535 = vadd.f32 %v473, %v529
    %v536 = vadd.f32 %v476, %v532
    %v537 = vtanh.pop %v535
    %v538 = vtanh.pop %v536
    %v539 = vpack.c.bf16 %v538, %v537
    %540 = vst.msk [vmem:[#allocation2] sm:$0xff] %vm106, %v539
    %542 = vrot.lane.b32.xlu0 %v539, 32
    %v543 = vpop.permute.xlu0 %542
    %vm545 = vcmask 523520
    %546 = vst.msk [vmem:[#allocation4] sm:$0xff] %vm545, %v543
    %v547 = vld [vmem:[#allocation2] sm:$0xff]
    %s548 = scalar_lea.vmem [#allocation8], 64
    %v549 = vld [vmem:[%s548] sm:$0xff]
    %v550 = vld [vmem:[%s548 + $0x8] sm:$0xff]
    %v551 = vld [vmem:[%s548 + $0x10] sm:$0xff]
    %v552 = vld [vmem:[%s548 + $0x18] sm:$0xff]
    %v557 = vunpack.c.l.b16 %v549
    %v558 = vunpack.c.h.b16 %v549
    %v559 = vunpack.c.l.b16 %v550
    %v560 = vunpack.c.h.b16 %v550
    %v561 = vunpack.c.l.b16 %v551
    %v562 = vunpack.c.h.b16 %v551
    %v563 = vunpack.c.l.b16 %v552
    %v564 = vunpack.c.h.b16 %v552
    %v565 = vpack.c.b16 %v559, %v557
    %v566 = vpack.c.b16 %v560, %v558
    %v567 = vpack.c.b16 %v563, %v561
    %v568 = vpack.c.b16 %v564, %v562
    %v574 = vsel %vm106, %v547, 0
    %576 = vmatprep.subr.bf16.mxu0 %v566
    %577 = vmatpush1.bf16.msra.mxu0 %v565
    %578 = vmatprep.subr.bf16.mxu0 %v568
    %579 = vmatpush1.bf16.msra.mxu0 %v567
    %580 = vmatprep.subr.bf16.mxu0 0
    %581 = vmatpush1.bf16.msra.mxu0 0
    %582 = vmatprep.subr.bf16.mxu0 0
    %583 = vmatpush1.bf16.msra.mxu0 0
    %584 = vmatprep.subr.bf16.mxu0 0
    %585 = vmatpush1.bf16.msra.mxu0 0
    %586 = vmatprep.subr.bf16.mxu0 0
    %587 = vmatpush1.bf16.msra.mxu0 0
    %588 = vmatprep.subr.bf16.mxu0 0
    %589 = vmatpush1.bf16.msra.mxu0 0
    %590 = vmatprep.subr.bf16.mxu0 0
    %591 = vmatpush1.bf16.msra.mxu0 0
    %592 = vmatprep.subr.bf16.mxu0 0
    %593 = vmatpush1.bf16.msra.mxu0 0
    %594 = vmatprep.subr.bf16.mxu0 0
    %595 = vmatpush1.bf16.msra.mxu0 0
    %596 = vmatprep.subr.bf16.mxu0 0
    %597 = vmatpush1.bf16.msra.mxu0 0
    %598 = vmatprep.subr.bf16.mxu0 0
    %599 = vmatpush1.bf16.msra.mxu0 0
    %600 = vmatprep.subr.bf16.mxu0 0
    %601 = vmatpush1.bf16.msra.mxu0 0
    %602 = vmatprep.subr.bf16.mxu0 0
    %603 = vmatpush1.bf16.msra.mxu0 0
    %604 = vmatprep.subr.bf16.mxu0 0
    %605 = vmatpush1.bf16.msra.mxu0 0
    %606 = vmatprep.subr.bf16.mxu0 0
    %607 = vmatpush1.bf16.msra.mxu0 0
    %608 = vmatprep.mubr.bf16.mxu0 0
    %609 = vmatmul.mubr.bf16.gmra.mrb[0].mxu0 %v574
    %v610 = vpop.f32.mrb[0].mxu0
    %v611 = vadd.f32 0.0, %v610
    %v612 = vpop.f32.mrb[0].mxu0
    %v613 = vadd.f32 0.0, %v612
    %v614 = vpop.f32.mrb[0].mxu0
    %v615 = vadd.f32 0.0, %v614
    %v616 = vpop.f32.mrb[0].mxu0
    %v617 = vadd.f32 0.0, %v616
    %618 = vdwg.mxu0
    %v619 = vpack.c.bf16 %v615, %v611
    %v620 = vpack.c.bf16 %v617, %v613
    %621 = vst.msk [vmem:[#allocation3] sm:$0xff] %vm106, %v619
    %623 = vrot.lane.b32.xlu0 %v619, 96
    %v624 = vpop.permute.xlu0 %623
    %626 = vst.msk [vmem:[#allocation3 + $0x8] sm:$0xff] %vm106, %v624
    %627 = vrot.lane.b32.xlu0 %v619, 64
    %v628 = vpop.permute.xlu0 %627
    %630 = vst.msk [vmem:[#allocation3 + $0x10] sm:$0xff] %vm106, %v628
    %631 = vrot.lane.b32.xlu0 %v619, 32
    %v632 = vpop.permute.xlu0 %631
    %634 = vst.msk [vmem:[#allocation3 + $0x18] sm:$0xff] %vm106, %v632
    %635 = vst.msk [vmem:[#allocation3 + $0x20] sm:$0xff] %vm106, %v620
    %s636 = scalar_lea.vmem %s3, 32
    %v637 = vld [vmem:[%s636] sm:$0xf]
    %v638 = vld [vmem:[%s636 + $0x4] sm:$0xf]
    %v639 = vld [vmem:[%s636 + $0x8] sm:$0xf]
    %v640 = vld [vmem:[%s636 + $0xc] sm:$0xf]
    %s641 = scalar_lea.vmem %s4, 2
    %v642 = vld [vmem:[%s641] sm:$0x1]
    %v644 = vlaneseq
    %v645 = vshrl.u32 %v644, 7
    %v646 = vsub.s32 0, %v645
    %v647 = vrot.slane %v642, %v646
    %v653 = vunpack.c.l.b16 %v637
    %v654 = vunpack.c.l.b16 %v638
    %v655 = vunpack.c.l.b16 %v639
    %v656 = vunpack.c.l.b16 %v640
    %v657 = vpack.c.b16 %v654, %v653
    %v658 = vpack.c.b16 %v656, %v655
    %661 = vmatprep.subr.bf16.mxu0 0
    %662 = vmatpush1.bf16.msra.mxu0 %v657
    %663 = vmatprep.subr.bf16.mxu0 0
    %664 = vmatpush1.bf16.msra.mxu0 %v658
    %665 = vmatprep.subr.bf16.mxu0 0
    %666 = vmatpush1.bf16.msra.mxu0 0
    %667 = vmatprep.subr.bf16.mxu0 0
    %668 = vmatpush1.bf16.msra.mxu0 0
    %669 = vmatprep.subr.bf16.mxu0 0
    %670 = vmatpush1.bf16.msra.mxu0 0
    %671 = vmatprep.subr.bf16.mxu0 0
    %672 = vmatpush1.bf16.msra.mxu0 0
    %673 = vmatprep.subr.bf16.mxu0 0
    %674 = vmatpush1.bf16.msra.mxu0 0
    %675 = vmatprep.subr.bf16.mxu0 0
    %676 = vmatpush1.bf16.msra.mxu0 0
    %677 = vmatprep.subr.bf16.mxu0 0
    %678 = vmatpush1.bf16.msra.mxu0 0
    %679 = vmatprep.subr.bf16.mxu0 0
    %680 = vmatpush1.bf16.msra.mxu0 0
    %681 = vmatprep.subr.bf16.mxu0 0
    %682 = vmatpush1.bf16.msra.mxu0 0
    %683 = vmatprep.subr.bf16.mxu0 0
    %684 = vmatpush1.bf16.msra.mxu0 0
    %685 = vmatprep.subr.bf16.mxu0 0
    %686 = vmatpush1.bf16.msra.mxu0 0
    %687 = vmatprep.subr.bf16.mxu0 0
    %688 = vmatpush1.bf16.msra.mxu0 0
    %689 = vmatprep.subr.bf16.mxu0 0
    %690 = vmatpush1.bf16.msra.mxu0 0
    %691 = vmatprep.subr.bf16.mxu0 0
    %692 = vmatpush1.bf16.msra.mxu0 0
    %693 = vmatprep.mubr.bf16.mxu0 0
    %694 = vmatmul.mubr.bf16.gmra.mrb[0].mxu0 %v574
    %v695 = vpop.f32.mrb[0].mxu0
    %v696 = vadd.f32 %v647, %v695
    %v697 = vpop.f32.mrb[0].mxu0
    %v698 = vpop.f32.mrb[0].mxu0
    %v699 = vadd.f32 %v647, %v698
    %v700 = vpop.f32.mrb[0].mxu0
    %701 = vdwg.mxu0
    %v702 = vld [vmem:[#allocation5] sm:$0xf]
    %v703 = vld [vmem:[#allocation5 + $0x4] sm:$0xf]
    %v704 = vld [vmem:[#allocation3] sm:$0xff]
    %v705 = vld [vmem:[#allocation3 + $0x8] sm:$0xff]
    %v706 = vld [vmem:[#allocation3 + $0x10] sm:$0xff]
    %v707 = vld [vmem:[#allocation3 + $0x18] sm:$0xff]
    %v708 = vld [vmem:[#allocation3 + $0x20] sm:$0xff]
    %v711 = vunpack.c.l.b16 %v702
    %v712 = vunpack.c.l.b16 %v703
    %v713 = vpack.c.b16 %v712, %v711
    %v715 = vsel %vm272, %v713, 0
    %717 = vmatprep.subr.bf16.mxu0 0
    %718 = vmatpush1.bf16.msra.mxu0 %v704
    %719 = vmatprep.subr.bf16.mxu0 0
    %720 = vmatpush1.bf16.msra.mxu0 %v705
    %721 = vmatprep.subr.bf16.mxu0 0
    %722 = vmatpush1.bf16.msra.mxu0 %v706
    %723 = vmatprep.subr.bf16.mxu0 0
    %724 = vmatpush1.bf16.msra.mxu0 %v707
    %725 = vmatprep.subr.bf16.mxu0 0
    %726 = vmatpush1.bf16.msra.mxu0 %v708
    %727 = vmatprep.subr.bf16.mxu0 0
    %728 = vmatpush1.bf16.msra.mxu0 0
    %729 = vmatprep.subr.bf16.mxu0 0
    %730 = vmatpush1.bf16.msra.mxu0 0
    %731 = vmatprep.subr.bf16.mxu0 0
    %732 = vmatpush1.bf16.msra.mxu0 0
    %733 = vmatprep.subr.bf16.mxu0 0
    %734 = vmatpush1.bf16.msra.mxu0 0
    %735 = vmatprep.subr.bf16.mxu0 0
    %736 = vmatpush1.bf16.msra.mxu0 0
    %737 = vmatprep.subr.bf16.mxu0 0
    %738 = vmatpush1.bf16.msra.mxu0 0
    %739 = vmatprep.subr.bf16.mxu0 0
    %740 = vmatpush1.bf16.msra.mxu0 0
    %741 = vmatprep.subr.bf16.mxu0 0
    %742 = vmatpush1.bf16.msra.mxu0 0
    %743 = vmatprep.subr.bf16.mxu0 0
    %744 = vmatpush1.bf16.msra.mxu0 0
    %745 = vmatprep.subr.bf16.mxu0 0
    %746 = vmatpush1.bf16.msra.mxu0 0
    %747 = vmatprep.subr.bf16.mxu0 0
    %748 = vmatpush1.bf16.msra.mxu0 0
    %749 = vmatprep.mubr.bf16.mxu0 0
    %750 = vmatmul.mubr.bf16.gmra.mrb[0].mxu0 %v715
    %v751 = vpop.f32.mrb[0].mxu0
    %v752 = vadd.f32 0.0, %v751
    %v753 = vpop.f32.mrb[0].mxu0
    %v754 = vpop.f32.mrb[0].mxu0
    %v755 = vadd.f32 0.0, %v754
    %v756 = vpop.f32.mrb[0].mxu0
    %757 = vdwg.mxu0
    %v758 = vadd.f32 %v696, %v752
    %v759 = vadd.f32 %v699, %v755
    %v760 = vtanh.pop %v758
    %v761 = vtanh.pop %v759
    %v762 = vpack.c.bf16 %v761, %v760
    %763 = vst.msk [vmem:[#allocation2] sm:$0xff] %vm106, %v762
    %765 = vrot.lane.b32.xlu0 %v762, 64
    %v766 = vpop.permute.xlu0 %765
    %vm768 = vcmask 785920
    %769 = vst.msk [vmem:[#allocation4] sm:$0xff] %vm768, %v766
    %v770 = vld [vmem:[#allocation2] sm:$0xff]
    %s771 = scalar_lea.vmem [#allocation8], 96
    %v772 = vld [vmem:[%s771] sm:$0xff]
    %v773 = vld [vmem:[%s771 + $0x8] sm:$0xff]
    %v774 = vld [vmem:[%s771 + $0x10] sm:$0xff]
    %v775 = vld [vmem:[%s771 + $0x18] sm:$0xff]
    %v780 = vunpack.c.l.b16 %v772
    %v781 = vunpack.c.h.b16 %v772
    %v782 = vunpack.c.l.b16 %v773
    %v783 = vunpack.c.h.b16 %v773
    %v784 = vunpack.c.l.b16 %v774
    %v785 = vunpack.c.h.b16 %v774
    %v786 = vunpack.c.l.b16 %v775
    %v787 = vunpack.c.h.b16 %v775
    %v788 = vpack.c.b16 %v782, %v780
    %v789 = vpack.c.b16 %v783, %v781
    %v790 = vpack.c.b16 %v786, %v784
    %v791 = vpack.c.b16 %v787, %v785
    %v797 = vsel %vm106, %v770, 0
    %799 = vmatprep.subr.bf16.mxu0 %v789
    %800 = vmatpush1.bf16.msra.mxu0 %v788
    %801 = vmatprep.subr.bf16.mxu0 %v791
    %802 = vmatpush1.bf16.msra.mxu0 %v790
    %803 = vmatprep.subr.bf16.mxu0 0
    %804 = vmatpush1.bf16.msra.mxu0 0
    %805 = vmatprep.subr.bf16.mxu0 0
    %806 = vmatpush1.bf16.msra.mxu0 0
    %807 = vmatprep.subr.bf16.mxu0 0
    %808 = vmatpush1.bf16.msra.mxu0 0
    %809 = vmatprep.subr.bf16.mxu0 0
    %810 = vmatpush1.bf16.msra.mxu0 0
    %811 = vmatprep.subr.bf16.mxu0 0
    %812 = vmatpush1.bf16.msra.mxu0 0
    %813 = vmatprep.subr.bf16.mxu0 0
    %814 = vmatpush1.bf16.msra.mxu0 0
    %815 = vmatprep.subr.bf16.mxu0 0
    %816 = vmatpush1.bf16.msra.mxu0 0
    %817 = vmatprep.subr.bf16.mxu0 0
    %818 = vmatpush1.bf16.msra.mxu0 0
    %819 = vmatprep.subr.bf16.mxu0 0
    %820 = vmatpush1.bf16.msra.mxu0 0
    %821 = vmatprep.subr.bf16.mxu0 0
    %822 = vmatpush1.bf16.msra.mxu0 0
    %823 = vmatprep.subr.bf16.mxu0 0
    %824 = vmatpush1.bf16.msra.mxu0 0
    %825 = vmatprep.subr.bf16.mxu0 0
    %826 = vmatpush1.bf16.msra.mxu0 0
    %827 = vmatprep.subr.bf16.mxu0 0
    %828 = vmatpush1.bf16.msra.mxu0 0
    %829 = vmatprep.subr.bf16.mxu0 0
    %830 = vmatpush1.bf16.msra.mxu0 0
    %831 = vmatprep.mubr.bf16.mxu0 0
    %832 = vmatmul.mubr.bf16.gmra.mrb[0].mxu0 %v797
    %v833 = vpop.f32.mrb[0].mxu0
    %v834 = vadd.f32 0.0, %v833
    %v835 = vpop.f32.mrb[0].mxu0
    %v836 = vadd.f32 0.0, %v835
    %v837 = vpop.f32.mrb[0].mxu0
    %v838 = vadd.f32 0.0, %v837
    %v839 = vpop.f32.mrb[0].mxu0
    %v840 = vadd.f32 0.0, %v839
    %841 = vdwg.mxu0
    %v842 = vpack.c.bf16 %v838, %v834
    %v843 = vpack.c.bf16 %v840, %v836
    %844 = vst.msk [vmem:[#allocation3] sm:$0xff] %vm106, %v842
    %846 = vrot.lane.b32.xlu0 %v842, 96
    %v847 = vpop.permute.xlu0 %846
    %849 = vst.msk [vmem:[#allocation3 + $0x8] sm:$0xff] %vm106, %v847
    %850 = vrot.lane.b32.xlu0 %v842, 64
    %v851 = vpop.permute.xlu0 %850
    %853 = vst.msk [vmem:[#allocation3 + $0x10] sm:$0xff] %vm106, %v851
    %854 = vrot.lane.b32.xlu0 %v842, 32
    %v855 = vpop.permute.xlu0 %854
    %857 = vst.msk [vmem:[#allocation3 + $0x18] sm:$0xff] %vm106, %v855
    %858 = vst.msk [vmem:[#allocation3 + $0x20] sm:$0xff] %vm106, %v843
    %s859 = scalar_lea.vmem %s3, 48
    %v860 = vld [vmem:[%s859] sm:$0xf]
    %v861 = vld [vmem:[%s859 + $0x4] sm:$0xf]
    %v862 = vld [vmem:[%s859 + $0x8] sm:$0xf]
    %v863 = vld [vmem:[%s859 + $0xc] sm:$0xf]
    %s864 = scalar_lea.vmem %s4, 3
    %v865 = vld [vmem:[%s864] sm:$0x1]
    %v867 = vlaneseq
    %v868 = vshrl.u32 %v867, 7
    %v869 = vsub.s32 0, %v868
    %v870 = vrot.slane %v865, %v869
    %v876 = vunpack.c.l.b16 %v860
    %v877 = vunpack.c.l.b16 %v861
    %v878 = vunpack.c.l.b16 %v862
    %v879 = vunpack.c.l.b16 %v863
    %v880 = vpack.c.b16 %v877, %v876
    %v881 = vpack.c.b16 %v879, %v878
    %884 = vmatprep.subr.bf16.mxu0 0
    %885 = vmatpush1.bf16.msra.mxu0 %v880
    %886 = vmatprep.subr.bf16.mxu0 0
    %887 = vmatpush1.bf16.msra.mxu0 %v881
    %888 = vmatprep.subr.bf16.mxu0 0
    %889 = vmatpush1.bf16.msra.mxu0 0
    %890 = vmatprep.subr.bf16.mxu0 0
    %891 = vmatpush1.bf16.msra.mxu0 0
    %892 = vmatprep.subr.bf16.mxu0 0
    %893 = vmatpush1.bf16.msra.mxu0 0
    %894 = vmatprep.subr.bf16.mxu0 0
    %895 = vmatpush1.bf16.msra.mxu0 0
    %896 = vmatprep.subr.bf16.mxu0 0
    %897 = vmatpush1.bf16.msra.mxu0 0
    %898 = vmatprep.subr.bf16.mxu0 0
    %899 = vmatpush1.bf16.msra.mxu0 0
    %900 = vmatprep.subr.bf16.mxu0 0
    %901 = vmatpush1.bf16.msra.mxu0 0
    %902 = vmatprep.subr.bf16.mxu0 0
    %903 = vmatpush1.bf16.msra.mxu0 0
    %904 = vmatprep.subr.bf16.mxu0 0
    %905 = vmatpush1.bf16.msra.mxu0 0
    %906 = vmatprep.subr.bf16.mxu0 0
    %907 = vmatpush1.bf16.msra.mxu0 0
    %908 = vmatprep.subr.bf16.mxu0 0
    %909 = vmatpush1.bf16.msra.mxu0 0
    %910 = vmatprep.subr.bf16.mxu0 0
    %911 = vmatpush1.bf16.msra.mxu0 0
    %912 = vmatprep.subr.bf16.mxu0 0
    %913 = vmatpush1.bf16.msra.mxu0 0
    %914 = vmatprep.subr.bf16.mxu0 0
    %915 = vmatpush1.bf16.msra.mxu0 0
    %916 = vmatprep.mubr.bf16.mxu0 0
    %917 = vmatmul.mubr.bf16.gmra.mrb[0].mxu0 %v797
    %v918 = vpop.f32.mrb[0].mxu0
    %v919 = vadd.f32 %v870, %v918
    %v920 = vpop.f32.mrb[0].mxu0
    %v921 = vpop.f32.mrb[0].mxu0
    %v922 = vadd.f32 %v870, %v921
    %v923 = vpop.f32.mrb[0].mxu0
    %924 = vdwg.mxu0
    %v925 = vld [vmem:[#allocation5] sm:$0xf]
    %v926 = vld [vmem:[#allocation5 + $0x4] sm:$0xf]
    %v927 = vld [vmem:[#allocation3] sm:$0xff]
    %v928 = vld [vmem:[#allocation3 + $0x8] sm:$0xff]
    %v929 = vld [vmem:[#allocation3 + $0x10] sm:$0xff]
    %v930 = vld [vmem:[#allocation3 + $0x18] sm:$0xff]
    %v931 = vld [vmem:[#allocation3 + $0x20] sm:$0xff]
    %v934 = vunpack.c.l.b16 %v925
    %v935 = vunpack.c.l.b16 %v926
    %v936 = vpack.c.b16 %v935, %v934
    %v938 = vsel %vm272, %v936, 0
    %940 = vmatprep.subr.bf16.mxu0 0
    %941 = vmatpush1.bf16.msra.mxu0 %v927
    %942 = vmatprep.subr.bf16.mxu0 0
    %943 = vmatpush1.bf16.msra.mxu0 %v928
    %944 = vmatprep.subr.bf16.mxu0 0
    %945 = vmatpush1.bf16.msra.mxu0 %v929
    %946 = vmatprep.subr.bf16.mxu0 0
    %947 = vmatpush1.bf16.msra.mxu0 %v930
    %948 = vmatprep.subr.bf16.mxu0 0
    %949 = vmatpush1.bf16.msra.mxu0 %v931
    %950 = vmatprep.subr.bf16.mxu0 0
    %951 = vmatpush1.bf16.msra.mxu0 0
    %952 = vmatprep.subr.bf16.mxu0 0
    %953 = vmatpush1.bf16.msra.mxu0 0
    %954 = vmatprep.subr.bf16.mxu0 0
    %955 = vmatpush1.bf16.msra.mxu0 0
    %956 = vmatprep.subr.bf16.mxu0 0
    %957 = vmatpush1.bf16.msra.mxu0 0
    %958 = vmatprep.subr.bf16.mxu0 0
    %959 = vmatpush1.bf16.msra.mxu0 0
    %960 = vmatprep.subr.bf16.mxu0 0
    %961 = vmatpush1.bf16.msra.mxu0 0
    %962 = vmatprep.subr.bf16.mxu0 0
    %963 = vmatpush1.bf16.msra.mxu0 0
    %964 = vmatprep.subr.bf16.mxu0 0
    %965 = vmatpush1.bf16.msra.mxu0 0
    %966 = vmatprep.subr.bf16.mxu0 0
    %967 = vmatpush1.bf16.msra.mxu0 0
    %968 = vmatprep.subr.bf16.mxu0 0
    %969 = vmatpush1.bf16.msra.mxu0 0
    %970 = vmatprep.subr.bf16.mxu0 0
    %971 = vmatpush1.bf16.msra.mxu0 0
    %972 = vmatprep.mubr.bf16.mxu0 0
    %973 = vmatmul.mubr.bf16.gmra.mrb[0].mxu0 %v938
    %v974 = vpop.f32.mrb[0].mxu0
    %v975 = vadd.f32 0.0, %v974
    %v976 = vpop.f32.mrb[0].mxu0
    %v977 = vpop.f32.mrb[0].mxu0
    %v978 = vadd.f32 0.0, %v977
    %v979 = vpop.f32.mrb[0].mxu0
    %980 = vdwg.mxu0
    %v981 = vadd.f32 %v919, %v975
    %v982 = vadd.f32 %v922, %v978
    %v983 = vtanh.pop %v981
    %v984 = vtanh.pop %v982
    %v985 = vpack.c.bf16 %v984, %v983
    %986 = vst.msk [vmem:[#allocation2] sm:$0xff] %vm106, %v985
    %988 = vrot.lane.b32.xlu0 %v985, 96
    %v989 = vpop.permute.xlu0 %988
    %vm991 = vcmask 1048320
    %992 = vst.msk [vmem:[#allocation4] sm:$0xff] %vm991, %v989
    %v993 = vld [vmem:[#allocation4] sm:$0xff]
    %v994 = vld [vmem:[%s5] sm:$0x1]
    %vm995 = vcmask 130048
    %v997 = vsel %vm995, %v994, 0
    %999 = vmatprep.subr.bf16.mxu0 0
    %1000 = vmatpush1.bf16.msra.mxu0 %v993
    %1001 = vmatprep.subr.bf16.mxu0 0
    %1002 = vmatpush1.bf16.msra.mxu0 0
    %1003 = vmatprep.subr.bf16.mxu0 0
    %1004 = vmatpush1.bf16.msra.mxu0 0
    %1005 = vmatprep.subr.bf16.mxu0 0
    %1006 = vmatpush1.bf16.msra.mxu0 0
    %1007 = vmatprep.subr.bf16.mxu0 0
    %1008 = vmatpush1.bf16.msra.mxu0 0
    %1009 = vmatprep.subr.bf16.mxu0 0
    %1010 = vmatpush1.bf16.msra.mxu0 0
    %1011 = vmatprep.subr.bf16.mxu0 0
    %1012 = vmatpush1.bf16.msra.mxu0 0
    %1013 = vmatprep.subr.bf16.mxu0 0
    %1014 = vmatpush1.bf16.msra.mxu0 0
    %1015 = vmatprep.subr.bf16.mxu0 0
    %1016 = vmatpush1.bf16.msra.mxu0 0
    %1017 = vmatprep.subr.bf16.mxu0 0
    %1018 = vmatpush1.bf16.msra.mxu0 0
    %1019 = vmatprep.subr.bf16.mxu0 0
    %1020 = vmatpush1.bf16.msra.mxu0 0
    %1021 = vmatprep.subr.bf16.mxu0 0
    %1022 = vmatpush1.bf16.msra.mxu0 0
    %1023 = vmatprep.subr.bf16.mxu0 0
    %1024 = vmatpush1.bf16.msra.mxu0 0
    %1025 = vmatprep.subr.bf16.mxu0 0
    %1026 = vmatpush1.bf16.msra.mxu0 0
    %1027 = vmatprep.subr.bf16.mxu0 0
    %1028 = vmatpush1.bf16.msra.mxu0 0
    %1029 = vmatprep.subr.bf16.mxu0 0
    %1030 = vmatpush1.bf16.msra.mxu0 0
    %1031 = vmatprep.mubr.bf16.mxu0 0
    %1032 = vmatmul.mubr.bf16.gmra.mrb[0].mxu0 %v997
    %v1033 = vpop.f32.mrb[0].mxu0
    %v1034 = vadd.f32 0.0, %v1033
    %v1035 = vpop.f32.mrb[0].mxu0
    %v1036 = vpop.f32.mrb[0].mxu0
    %v1037 = vpop.f32.mrb[0].mxu0
    %1038 = vdwg.mxu0
    %v1039 = vpack.c.bf16 %v1034, %v1034
    %v1040 = vld [vmem:[%s6] sm:$0x1]
    %v1042 = vsel %vm995, %v1040, 0
    %1044 = vmatprep.subr.bf16.mxu0 0
    %1045 = vmatpush1.bf16.msra.mxu0 %v993
    %1046 = vmatprep.subr.bf16.mxu0 0
    %1047 = vmatpush1.bf16.msra.mxu0 0
    %1048 = vmatprep.subr.bf16.mxu0 0
    %1049 = vmatpush1.bf16.msra.mxu0 0
    %1050 = vmatprep.subr.bf16.mxu0 0
    %1051 = vmatpush1.bf16.msra.mxu0 0
    %1052 = vmatprep.subr.bf16.mxu0 0
    %1053 = vmatpush1.bf16.msra.mxu0 0
    %1054 = vmatprep.subr.bf16.mxu0 0
    %1055 = vmatpush1.bf16.msra.mxu0 0
    %1056 = vmatprep.subr.bf16.mxu0 0
    %1057 = vmatpush1.bf16.msra.mxu0 0
    %1058 = vmatprep.subr.bf16.mxu0 0
    %1059 = vmatpush1.bf16.msra.mxu0 0
    %1060 = vmatprep.subr.bf16.mxu0 0
    %1061 = vmatpush1.bf16.msra.mxu0 0
    %1062 = vmatprep.subr.bf16.mxu0 0
    %1063 = vmatpush1.bf16.msra.mxu0 0
    %1064 = vmatprep.subr.bf16.mxu0 0
    %1065 = vmatpush1.bf16.msra.mxu0 0
    %1066 = vmatprep.subr.bf16.mxu0 0
    %1067 = vmatpush1.bf16.msra.mxu0 0
    %1068 = vmatprep.subr.bf16.mxu0 0
    %1069 = vmatpush1.bf16.msra.mxu0 0
    %1070 = vmatprep.subr.bf16.mxu0 0
    %1071 = vmatpush1.bf16.msra.mxu0 0
    %1072 = vmatprep.subr.bf16.mxu0 0
    %1073 = vmatpush1.bf16.msra.mxu0 0
    %1074 = vmatprep.subr.bf16.mxu0 0
    %1075 = vmatpush1.bf16.msra.mxu0 0
    %1076 = vmatprep.mubr.bf16.mxu0 0
    %1077 = vmatmul.mubr.bf16.gmra.mrb[0].mxu0 %v1042
    %v1078 = vpop.f32.mrb[0].mxu0
    %v1079 = vadd.f32 0.0, %v1078
    %v1080 = vpop.f32.mrb[0].mxu0
    %v1081 = vpop.f32.mrb[0].mxu0
    %v1082 = vpop.f32.mrb[0].mxu0
    %1083 = vdwg.mxu0
    %v1084 = vpack.c.bf16 %v1079, %v1079
    %v1085 = vld [vmem:[#allocation10] sm:$0xf]
    %v1086 = vld [vmem:[#allocation10 + $0x4] sm:$0xf]
    %v1087 = vld [vmem:[#allocation10 + $0x8] sm:$0xf]
    %v1088 = vld [vmem:[#allocation10 + $0xc] sm:$0xf]
    %v1089 = vld [vmem:[#allocation10 + $0x10] sm:$0xf]
    %v1090 = vld [vmem:[#allocation10 + $0x14] sm:$0xf]
    %v1091 = vld [vmem:[#allocation10 + $0x18] sm:$0xf]
    %v1092 = vld [vmem:[#allocation10 + $0x1c] sm:$0xf]
    %v1093 = vld [vmem:[#allocation10 + $0x20] sm:$0xf]
    %v1094 = vld [vmem:[#allocation10 + $0x24] sm:$0xf]
    %v1095 = vld [vmem:[#allocation10 + $0x28] sm:$0xf]
    %v1096 = vld [vmem:[#allocation10 + $0x2c] sm:$0xf]
    %v1097 = vld [vmem:[#allocation10 + $0x30] sm:$0xf]
    %v1098 = vld [vmem:[#allocation10 + $0x34] sm:$0xf]
    %v1099 = vld [vmem:[#allocation10 + $0x38] sm:$0xf]
    %v1100 = vld [vmem:[#allocation10 + $0x3c] sm:$0xf]
    %v1101 = vld [vmem:[#allocation11] sm:$0xf]
    %v1102 = vld [vmem:[#allocation11 + $0x4] sm:$0xf]
    %v1103 = vld [vmem:[#allocation11 + $0x8] sm:$0xf]
    %v1104 = vld [vmem:[#allocation11 + $0xc] sm:$0xf]
    %v1105 = vld [vmem:[#allocation11 + $0x10] sm:$0xf]
    %v1106 = vld [vmem:[#allocation11 + $0x14] sm:$0xf]
    %v1107 = vld [vmem:[#allocation11 + $0x18] sm:$0xf]
    %v1108 = vld [vmem:[#allocation11 + $0x1c] sm:$0xf]
    %v1109 = vld [vmem:[#allocation11 + $0x20] sm:$0xf]
    %v1110 = vld [vmem:[#allocation11 + $0x24] sm:$0xf]
    %v1111 = vld [vmem:[#allocation11 + $0x28] sm:$0xf]
    %v1112 = vld [vmem:[#allocation11 + $0x2c] sm:$0xf]
    %v1113 = vld [vmem:[#allocation11 + $0x30] sm:$0xf]
    %v1114 = vld [vmem:[#allocation11 + $0x34] sm:$0xf]
    %v1115 = vld [vmem:[#allocation11 + $0x38] sm:$0xf]
    %v1116 = vld [vmem:[#allocation11 + $0x3c] sm:$0xf]
    %v1133 = vunpack.c.l.b16 %v1101
    %v1134 = vunpack.c.l.b16 %v1102
    %v1135 = vunpack.c.l.b16 %v1103
    %v1136 = vunpack.c.l.b16 %v1104
    %v1137 = vunpack.c.l.b16 %v1105
    %v1138 = vunpack.c.l.b16 %v1106
    %v1139 = vunpack.c.l.b16 %v1107
    %v1140 = vunpack.c.l.b16 %v1108
    %v1141 = vunpack.c.l.b16 %v1109
    %v1142 = vunpack.c.l.b16 %v1110
    %v1143 = vunpack.c.l.b16 %v1111
    %v1144 = vunpack.c.l.b16 %v1112
    %v1145 = vunpack.c.l.b16 %v1113
    %v1146 = vunpack.c.l.b16 %v1114
    %v1147 = vunpack.c.l.b16 %v1115
    %v1148 = vunpack.c.l.b16 %v1116
    %v1149 = vpack.c.b16 %v1134, %v1133
    %v1150 = vpack.c.b16 %v1136, %v1135
    %v1151 = vpack.c.b16 %v1138, %v1137
    %v1152 = vpack.c.b16 %v1140, %v1139
    %v1153 = vpack.c.b16 %v1142, %v1141
    %v1154 = vpack.c.b16 %v1144, %v1143
    %v1155 = vpack.c.b16 %v1146, %v1145
    %v1156 = vpack.c.b16 %v1148, %v1147
    %1165 = vmatprep.subr.bf16.mxu0 0
    %1166 = vmatpush1.bf16.msra.mxu0 %v1149
    %1167 = vmatprep.subr.bf16.mxu0 0
    %1168 = vmatpush1.bf16.msra.mxu0 %v1150
    %1169 = vmatprep.subr.bf16.mxu0 0
    %1170 = vmatpush1.bf16.msra.mxu0 %v1151
    %1171 = vmatprep.subr.bf16.mxu0 0
    %1172 = vmatpush1.bf16.msra.mxu0 %v1152
    %1173 = vmatprep.subr.bf16.mxu0 0
    %1174 = vmatpush1.bf16.msra.mxu0 %v1153
    %1175 = vmatprep.subr.bf16.mxu0 0
    %1176 = vmatpush1.bf16.msra.mxu0 %v1154
    %1177 = vmatprep.subr.bf16.mxu0 0
    %1178 = vmatpush1.bf16.msra.mxu0 %v1155
    %1179 = vmatprep.subr.bf16.mxu0 0
    %1180 = vmatpush1.bf16.msra.mxu0 %v1156
    %1181 = vmatprep.subr.bf16.mxu0 0
    %1182 = vmatpush1.bf16.msra.mxu0 0
    %1183 = vmatprep.subr.bf16.mxu0 0
    %1184 = vmatpush1.bf16.msra.mxu0 0
    %1185 = vmatprep.subr.bf16.mxu0 0
    %1186 = vmatpush1.bf16.msra.mxu0 0
    %1187 = vmatprep.subr.bf16.mxu0 0
    %1188 = vmatpush1.bf16.msra.mxu0 0
    %1189 = vmatprep.subr.bf16.mxu0 0
    %1190 = vmatpush1.bf16.msra.mxu0 0
    %1191 = vmatprep.subr.bf16.mxu0 0
    %1192 = vmatpush1.bf16.msra.mxu0 0
    %1193 = vmatprep.subr.bf16.mxu0 0
    %1194 = vmatpush1.bf16.msra.mxu0 0
    %1195 = vmatprep.subr.bf16.mxu0 0
    %1196 = vmatpush1.bf16.msra.mxu0 0
    %1197 = vmatprep.mubr.bf16.mxu0 0
    %1198 = vmatmul.mubr.bf16.gmra.mrb[0].mxu0 %v1084
    %v1199 = vpop.f32.mrb[0].mxu0
    %v1200 = vadd.f32 0.0, %v1199
    %v1201 = vpop.f32.mrb[0].mxu0
    %v1202 = vpop.f32.mrb[0].mxu0
    %v1203 = vpop.f32.mrb[0].mxu0
    %1204 = vdwg.mxu0
    %v1221 = vunpack.c.l.b16 %v1085
    %v1222 = vunpack.c.l.b16 %v1086
    %v1223 = vunpack.c.l.b16 %v1087
    %v1224 = vunpack.c.l.b16 %v1088
    %v1225 = vunpack.c.l.b16 %v1089
    %v1226 = vunpack.c.l.b16 %v1090
    %v1227 = vunpack.c.l.b16 %v1091
    %v1228 = vunpack.c.l.b16 %v1092
    %v1229 = vunpack.c.l.b16 %v1093
    %v1230 = vunpack.c.l.b16 %v1094
    %v1231 = vunpack.c.l.b16 %v1095
    %v1232 = vunpack.c.l.b16 %v1096
    %v1233 = vunpack.c.l.b16 %v1097
    %v1234 = vunpack.c.l.b16 %v1098
    %v1235 = vunpack.c.l.b16 %v1099
    %v1236 = vunpack.c.l.b16 %v1100
    %v1237 = vpack.c.b16 %v1222, %v1221
    %v1238 = vpack.c.b16 %v1224, %v1223
    %v1239 = vpack.c.b16 %v1226, %v1225
    %v1240 = vpack.c.b16 %v1228, %v1227
    %v1241 = vpack.c.b16 %v1230, %v1229
    %v1242 = vpack.c.b16 %v1232, %v1231
    %v1243 = vpack.c.b16 %v1234, %v1233
    %v1244 = vpack.c.b16 %v1236, %v1235
    %1253 = vmatprep.subr.bf16.mxu0 0
    %1254 = vmatpush1.bf16.msra.mxu0 %v1237
    %1255 = vmatprep.subr.bf16.mxu0 0
    %1256 = vmatpush1.bf16.msra.mxu0 %v1238
    %1257 = vmatprep.subr.bf16.mxu0 0
    %1258 = vmatpush1.bf16.msra.mxu0 %v1239
    %1259 = vmatprep.subr.bf16.mxu0 0
    %1260 = vmatpush1.bf16.msra.mxu0 %v1240
    %1261 = vmatprep.subr.bf16.mxu0 0
    %1262 = vmatpush1.bf16.msra.mxu0 %v1241
    %1263 = vmatprep.subr.bf16.mxu0 0
    %1264 = vmatpush1.bf16.msra.mxu0 %v1242
    %1265 = vmatprep.subr.bf16.mxu0 0
    %1266 = vmatpush1.bf16.msra.mxu0 %v1243
    %1267 = vmatprep.subr.bf16.mxu0 0
    %1268 = vmatpush1.bf16.msra.mxu0 %v1244
    %1269 = vmatprep.subr.bf16.mxu0 0
    %1270 = vmatpush1.bf16.msra.mxu0 0
    %1271 = vmatprep.subr.bf16.mxu0 0
    %1272 = vmatpush1.bf16.msra.mxu0 0
    %1273 = vmatprep.subr.bf16.mxu0 0
    %1274 = vmatpush1.bf16.msra.mxu0 0
    %1275 = vmatprep.subr.bf16.mxu0 0
    %1276 = vmatpush1.bf16.msra.mxu0 0
    %1277 = vmatprep.subr.bf16.mxu0 0
    %1278 = vmatpush1.bf16.msra.mxu0 0
    %1279 = vmatprep.subr.bf16.mxu0 0
    %1280 = vmatpush1.bf16.msra.mxu0 0
    %1281 = vmatprep.subr.bf16.mxu0 0
    %1282 = vmatpush1.bf16.msra.mxu0 0
    %1283 = vmatprep.subr.bf16.mxu0 0
    %1284 = vmatpush1.bf16.msra.mxu0 0
    %1285 = vmatprep.mubr.bf16.mxu0 0
    %1286 = vmatmul.mubr.bf16.gmra.mrb[0].mxu0 %v1039
    %v1287 = vpop.f32.mrb[0].mxu0
    %v1288 = vadd.f32 %v1200, %v1287
    %v1289 = vpop.f32.mrb[0].mxu0
    %v1290 = vpop.f32.mrb[0].mxu0
    %v1291 = vpop.f32.mrb[0].mxu0
    %1292 = vdwg.mxu0
    %v1293 = vld [vmem:[%s9] sm:$0x1]
    %v1295 = vlaneseq
    %v1296 = vshrl.u32 %v1295, 7
    %v1297 = vsub.s32 0, %v1296
    %v1298 = vrot.slane %v1293, %v1297
    %v1300 = vadd.f32 %v1288, %v1298
    %v1301 = vmax.f32 %v1300, 0.0
    %v1302 = vpack.c.bf16 %v1301, %v1301
    %v1303 = vld [vmem:[%s10] sm:$0xf]
    %v1304 = vld [vmem:[%s10 + $0x4] sm:$0xf]
    %v1305 = vld [vmem:[%s10 + $0x8] sm:$0xf]
    %v1306 = vld [vmem:[%s10 + $0xc] sm:$0xf]
    %v1307 = vld [vmem:[%s10 + $0x10] sm:$0xf]
    %v1308 = vld [vmem:[%s10 + $0x14] sm:$0xf]
    %v1309 = vld [vmem:[%s10 + $0x18] sm:$0xf]
    %v1310 = vld [vmem:[%s10 + $0x1c] sm:$0xf]
    %v1311 = vld [vmem:[%s10 + $0x20] sm:$0xf]
    %v1312 = vld [vmem:[%s10 + $0x24] sm:$0xf]
    %v1313 = vld [vmem:[%s10 + $0x28] sm:$0xf]
    %v1314 = vld [vmem:[%s10 + $0x2c] sm:$0xf]
    %v1315 = vld [vmem:[%s10 + $0x30] sm:$0xf]
    %v1316 = vld [vmem:[%s10 + $0x34] sm:$0xf]
    %v1317 = vld [vmem:[%s10 + $0x38] sm:$0xf]
    %v1318 = vld [vmem:[%s10 + $0x3c] sm:$0xf]
    %v1319 = vld [vmem:[%s11] sm:$0x1]
    %v1321 = vlaneseq
    %v1322 = vshrl.u32 %v1321, 7
    %v1323 = vsub.s32 0, %v1322
    %v1324 = vrot.slane %v1319, %v1323
    %v1342 = vunpack.c.l.b16 %v1303
    %v1343 = vunpack.c.l.b16 %v1304
    %v1344 = vunpack.c.l.b16 %v1305
    %v1345 = vunpack.c.l.b16 %v1306
    %v1346 = vunpack.c.l.b16 %v1307
    %v1347 = vunpack.c.l.b16 %v1308
    %v1348 = vunpack.c.l.b16 %v1309
    %v1349 = vunpack.c.l.b16 %v1310
    %v1350 = vunpack.c.l.b16 %v1311
    %v1351 = vunpack.c.l.b16 %v1312
    %v1352 = vunpack.c.l.b16 %v1313
    %v1353 = vunpack.c.l.b16 %v1314
    %v1354 = vunpack.c.l.b16 %v1315
    %v1355 = vunpack.c.l.b16 %v1316
    %v1356 = vunpack.c.l.b16 %v1317
    %v1357 = vunpack.c.l.b16 %v1318
    %v1358 = vpack.c.b16 %v1343, %v1342
    %v1359 = vpack.c.b16 %v1345, %v1344
    %v1360 = vpack.c.b16 %v1347, %v1346
    %v1361 = vpack.c.b16 %v1349, %v1348
    %v1362 = vpack.c.b16 %v1351, %v1350
    %v1363 = vpack.c.b16 %v1353, %v1352
    %v1364 = vpack.c.b16 %v1355, %v1354
    %v1365 = vpack.c.b16 %v1357, %v1356
    %1374 = vmatprep.subr.bf16.mxu0 0
    %1375 = vmatpush1.bf16.msra.mxu0 %v1358
    %1376 = vmatprep.subr.bf16.mxu0 0
    %1377 = vmatpush1.bf16.msra.mxu0 %v1359
    %1378 = vmatprep.subr.bf16.mxu0 0
    %1379 = vmatpush1.bf16.msra.mxu0 %v1360
    %1380 = vmatprep.subr.bf16.mxu0 0
    %1381 = vmatpush1.bf16.msra.mxu0 %v1361
    %1382 = vmatprep.subr.bf16.mxu0 0
    %1383 = vmatpush1.bf16.msra.mxu0 %v1362
    %1384 = vmatprep.subr.bf16.mxu0 0
    %1385 = vmatpush1.bf16.msra.mxu0 %v1363
    %1386 = vmatprep.subr.bf16.mxu0 0
    %1387 = vmatpush1.bf16.msra.mxu0 %v1364
    %1388 = vmatprep.subr.bf16.mxu0 0
    %1389 = vmatpush1.bf16.msra.mxu0 %v1365
    %1390 = vmatprep.subr.bf16.mxu0 0
    %1391 = vmatpush1.bf16.msra.mxu0 0
    %1392 = vmatprep.subr.bf16.mxu0 0
    %1393 = vmatpush1.bf16.msra.mxu0 0
    %1394 = vmatprep.subr.bf16.mxu0 0
    %1395 = vmatpush1.bf16.msra.mxu0 0
    %1396 = vmatprep.subr.bf16.mxu0 0
    %1397 = vmatpush1.bf16.msra.mxu0 0
    %1398 = vmatprep.subr.bf16.mxu0 0
    %1399 = vmatpush1.bf16.msra.mxu0 0
    %1400 = vmatprep.subr.bf16.mxu0 0
    %1401 = vmatpush1.bf16.msra.mxu0 0
    %1402 = vmatprep.subr.bf16.mxu0 0
    %1403 = vmatpush1.bf16.msra.mxu0 0
    %1404 = vmatprep.subr.bf16.mxu0 0
    %1405 = vmatpush1.bf16.msra.mxu0 0
    %1406 = vmatprep.mubr.bf16.mxu0 0
    %1407 = vmatmul.mubr.bf16.gmra.mrb[0].mxu0 %v1302
    %v1408 = vpop.f32.mrb[0].mxu0
    %v1409 = vadd.f32 %v1324, %v1408
    %v1410 = vpop.f32.mrb[0].mxu0
    %v1411 = vpop.f32.mrb[0].mxu0
    %v1412 = vpop.f32.mrb[0].mxu0
    %1413 = vdwg.mxu0
    %vm1414 = vcmask 33792
    %v1415 = vsel %vm1414, %v1409, -inf
    %1416 = vmax.xlane.f32.xlu0 %v1415
    %v1417 = vpop.xlane.xlu0 %1416
    %v1418 = vsub.f32 %v1409, %v1417
    %v1419 = vmul.f32 %v1418, 1.442695
    %v1420 = vpow.pop %v1419
    %v1421 = vsel %vm1414, %v1420, 0.0
    %1422 = vadd.xlane.f32.xlu0 %v1421
    %v1423 = vpop.xlane.xlu0 %1422
    %v1424 = vlog2.pop %v1423
    %v1425 = vmul.f32 %v1424, 0.6931472
    %v1426 = vsub.f32 %v1418, %v1425
    %1427 = vst.msk [vmem:[#allocation13] sm:$0x3] %vm1414, %v1426
    // Predicated region
    $region66: #{tpu_custom_call.1} parent=1 // pred_check
      _
    $region67: #{tpu_custom_call.1} parent=1 // pred_check_branch
      %1429 = sbr.rel (0) target = $region69
    $region68: #{tpu_custom_call.1} parent=1 // pred_region
      %s1431 = ssub.s32 32, 32
      %1432 = vsyncadd [#allocation7], %s1431
      %s1434 = sshll.u32 [#allocation13], 4
      %s1435 = int_to_ptr.vmem [resolvable:$true] %s1434
      %1437 = dma.vmem_to_hbm [thread:$0]  %s1435, 32, %s12, [#allocation7]
    $region69: #{tpu_custom_call.1} parent=1 // pred_fallthru
      _
    // Predicated region
    $region70: #{tpu_custom_call.1} parent=1 // pred_check
      _
    $region71: #{tpu_custom_call.1} parent=1 // pred_check_branch
      %1439 = sbr.rel (0) target = $region73
    $region72: #{tpu_custom_call.1} parent=1 // pred_region
      %1440 = dma.done [#allocation7], 32
    $region73: #{tpu_custom_call.1} parent=1 // pred_fallthru
      _
    %1441 = vsyncpa [#allocation6], 1
    %1442 = vsyncpa [#allocation9], 1
    %1443 = vsyncpa [#allocation12], 1
    %1444 = vsyncpa [#allocation7], 1

</llo_original>
